<compile_context>
chip_gen: v7x
topology: tpu7x:2x2x1
jax: 0.10.0
libtpu: 0.0.40
codegen_flags: <defaults>
</compile_context>

<pallas_src>
import jax
import jax.numpy as jnp
from jax.experimental import pallas as pl
from jax.experimental.pallas import tpu as pltpu

# ---- FLAGS (small, consistent dims) ----
LSTM_SIZE = 32     # H
OUT_FILTERS = 8    # F (number of start/count choices)
NUM_BRANCHES = 2
NUM_LAYERS = 3
BATCH = 2

H = LSTM_SIZE
F = OUT_FILTERS
NUM_STEPS = 2 * NUM_BRANCHES                  # start+count decisions per layer
NUM_ACTIONS = NUM_LAYERS * NUM_STEPS          # total recorded actions

# ---- packed parameter slab layout (f32, 128 lanes wide, static rows) ----
R_GEMB_W  = 0                                  # [1, H]
R_GEMB_B  = 1                                  # [1, H]
R_REC_B   = 2                                  # [1, H]
R_BQ      = 3                                  # [1, H]   qrnn bias (for `after`)
R_ATTN_B  = 4                                  # [1, 2H]  fused attn biases
R_VATTN_W = 5                                  # [1, H]
R_VATTN_B = 6                                  # [1, 1]
R_REC_W   = 8                                  # [H, H]   layer-0 recurrence
R_STEP0_W = R_REC_W + H                        # [H, F]   folded step-0 head
R_ATTN_W  = R_STEP0_W + H                      # [H, 2H]  fused w_attn_1||w_attn_2
R_AFTER_W = R_ATTN_W + H                       # [F, H]   folded emb_last @ Wq
R_STEPF_W = R_AFTER_W + F                      # [(NUM_STEPS-1)*F, F] folded steps 1..
R_STEP_B  = R_STEPF_W + (NUM_STEPS - 1) * F    # NUM_STEPS rows of [1, F]
R_TOTAL   = ((R_STEP_B + NUM_STEPS + 7) // 8) * 8
SLAB_COLS = 128

_VMEM = pl.BlockSpec(memory_space=pltpu.MemorySpace.VMEM)


# ---------------------------------------------------------------------------
# Single fused kernel: the entire controller forward.
# ---------------------------------------------------------------------------
def _controller_kernel(x_ref, slab_ref, act_ref, skip_ref):
    B = x_ref.shape[0]
    f32, bf16 = jnp.float32, jnp.bfloat16

    # One-time resident loads from the packed slab (static views).
    gemb_w = slab_ref[R_GEMB_W:R_GEMB_W + 1, 0:H]
    gemb_b = slab_ref[R_GEMB_B:R_GEMB_B + 1, 0:H]
    rec_b  = slab_ref[R_REC_B:R_REC_B + 1, 0:H]
    bq     = slab_ref[R_BQ:R_BQ + 1, 0:H]
    attn_b = slab_ref[R_ATTN_B:R_ATTN_B + 1, 0:2 * H]
    v_row  = slab_ref[R_VATTN_W:R_VATTN_W + 1, 0:H]
    v_bias = slab_ref[R_VATTN_B:R_VATTN_B + 1, 0:1]           # [1, 1]
    rec_w   = slab_ref[R_REC_W:R_REC_W + H, 0:H].astype(bf16)
    step0_w = slab_ref[R_STEP0_W:R_STEP0_W + H, 0:F].astype(bf16)
    attn_w  = slab_ref[R_ATTN_W:R_ATTN_W + H, 0:2 * H].astype(bf16)
    after_w = slab_ref[R_AFTER_W:R_AFTER_W + F, 0:H].astype(bf16)
    stepf_w = [slab_ref[R_STEPF_W + t * F:R_STEPF_W + (t + 1) * F, 0:F].astype(bf16)
               for t in range(NUM_STEPS - 1)]
    step_b  = [slab_ref[R_STEP_B + t:R_STEP_B + t + 1, 0:F]
               for t in range(NUM_STEPS)]

    iota_f = jax.lax.broadcasted_iota(jnp.int32, (B, F), 1)
    col_l  = jax.lax.broadcasted_iota(jnp.int32, (B, NUM_LAYERS), 1)

    # inputs = g_emb(orig_inputs): rank-1 outer product stays on the VPU.
    inputs = x_ref[...] * gemb_w + gemb_b                      # [B, H] f32

    def pick(logits):
        # Greedy argmax: one-hot comes straight from the max compare (single
        # XLU reduce on the critical path); the index is derived off-path.
        m = jnp.max(logits, axis=1, keepdims=True)
        mask = logits == m
        onehot = mask.astype(bf16)
        action = jnp.min(jnp.where(mask, iota_f, F), axis=1, keepdims=True)
        return onehot, action

    actions, anchors, anchors_w1 = [], [], []

    for layer_id in range(NUM_LAYERS):
        # ---- serial chain of 2*NUM_BRANCHES decisions, one folded matmul each
        logits = jnp.dot(inputs.astype(bf16), step0_w,
                         preferred_element_type=f32) + step_b[0]
        onehot, act = pick(logits)
        actions.append(act)                                    # start action
        for t in range(1, NUM_STEPS):
            logits = jnp.dot(onehot, stepf_w[t - 1],
                             preferred_element_type=f32) + step_b[t]
            onehot, act = pick(logits)
            actions.append(act + (t & 1))                      # counts stored +1
        # after_branches = qrnn(last embedding lookup), folded
        after = jnp.dot(onehot, after_w, preferred_element_type=f32) + bq

        # ---- fused attention projections: [w_attn_1 | w_attn_2] in one matmul
        proj = jnp.dot(after.astype(bf16), attn_w,
                       preferred_element_type=f32) + attn_b
        aw1 = proj[:, 0:H]
        attn2 = proj[:, H:2 * H]

        if layer_id == 0:
            skip_ref[0] = jnp.zeros((B, NUM_LAYERS), jnp.int32)
            # layer 0: re-embed (stand-in for the buggy g_emb re-application)
            inputs = jnp.dot(after.astype(bf16), rec_w,
                             preferred_element_type=f32) + rec_b
        else:
            newx = jnp.zeros((B, H), f32)
            skip_row = jnp.zeros((B, NUM_LAYERS), jnp.int32)
            for l in range(layer_id):
                query = jnp.tanh(anchors_w1[l] + attn2)        # [B, H] f32
                q = jnp.sum(query * v_row, axis=1, keepdims=True) + v_bias
                take = q > 0.0      # == argmax(sigmoid([-q, q])), greedy
                newx = newx + jnp.where(take, anchors[l], 0.0)
                skip_row = skip_row + (col_l == l).astype(jnp.int32) * take.astype(jnp.int32)
            skip_ref[layer_id] = skip_row
            inputs = newx

        anchors.append(after)
        anchors_w1.append(aw1)

    # Single lane-dense store of all actions, built with associative masked adds.
    col_a = jax.lax.broadcasted_iota(jnp.int32, (B, NUM_ACTIONS), 1)
    slab = jnp.zeros((B, NUM_ACTIONS), jnp.int32)
    for k, a in enumerate(actions):
        slab = slab + (col_a == k).astype(jnp.int32) * a
    act_ref[...] = slab


# ---------------------------------------------------------------------------
# Wrapper: one pallas_call, two entry DMAs, whole thing jitted.
# ---------------------------------------------------------------------------
@jax.jit
def controller_forward(orig_inputs, param_slab):
    B = orig_inputs.shape[0]
    arc_actions, skip_slab = pl.pallas_call(
        _controller_kernel,
        out_shape=(
            jax.ShapeDtypeStruct((B, NUM_ACTIONS), jnp.int32),
            jax.ShapeDtypeStruct((NUM_LAYERS, B, NUM_LAYERS), jnp.int32),
        ),
        in_specs=[_VMEM, _VMEM],
        out_specs=(_VMEM, _VMEM),
    )(orig_inputs, param_slab)
    # Layer l > 0 attends over the l previous anchors.
    skips = [skip_slab[l, :, :l] for l in range(1, NUM_LAYERS)]
    return arc_actions, skips


# ---------------------------------------------------------------------------
# Offline parameter folding + packing (pure JAX, done once outside the kernel)
# ---------------------------------------------------------------------------
def pack_params(params):
    Wq, bq = params["qrnn_w"], params["qrnn_b"]

    # chain order inside a layer: start(b0), count(b0), start(b1), count(b1)
    head_w, head_b, embs = [], [], []
    for b in range(NUM_BRANCHES):
        head_w += [params["start_w"][b], params["count_w"][b]]
        head_b += [params["start_b"][b], params["count_b"][b]]
        embs   += [params["start_emb"][b], params["count_emb"][b]]

    # Fold the shared QRNN body (and the previous step's embedding) into each
    # head: every serial decision becomes one small matmul.
    step_w = [Wq @ head_w[0]] + [embs[t - 1] @ (Wq @ head_w[t])
                                 for t in range(1, NUM_STEPS)]
    step_bias = [bq @ head_w[t] + head_b[t] for t in range(NUM_STEPS)]
    after_w = embs[-1] @ Wq                                     # [F, H]

    attn_w = jnp.concatenate([params["w_attn_1_w"], params["w_attn_2_w"]], axis=1)
    attn_b = jnp.concatenate([params["w_attn_1_b"], params["w_attn_2_b"]], axis=1)

    slab = jnp.zeros((R_TOTAL, SLAB_COLS), jnp.float32)

    def put(s, r, a):
        return s.at[r:r + a.shape[0], 0:a.shape[1]].set(a)

    slab = put(slab, R_GEMB_W, params["g_emb_w"])
    slab = put(slab, R_GEMB_B, params["g_emb_b"])
    slab = put(slab, R_REC_B, params["g_emb_rec_b"])
    slab = put(slab, R_BQ, bq)
    slab = put(slab, R_ATTN_B, attn_b)
    slab = put(slab, R_VATTN_W, params["v_attn_w"])
    slab = put(slab, R_VATTN_B, params["v_attn_b"])
    slab = put(slab, R_REC_W, params["g_emb_rec_w"])
    slab = put(slab, R_STEP0_W, step_w[0])
    slab = put(slab, R_ATTN_W, attn_w)
    slab = put(slab, R_AFTER_W, after_w)
    for t in range(1, NUM_STEPS):
        slab = put(slab, R_STEPF_W + (t - 1) * F, step_w[t])
    for t in range(NUM_STEPS):
        slab = put(slab, R_STEP_B + t, step_bias[t])
    return slab


# ---------------------------------------------------------------------------
# Parameter construction (deterministic)
# ---------------------------------------------------------------------------
def make_params(key):
    NB = NUM_BRANCHES
    keys = iter(jax.random.split(key, 16))

    def w(shape):
        return 0.1 * jax.random.normal(next(keys), shape, jnp.float32)

    def b(shape):
        return jnp.zeros(shape, jnp.float32)

    return {
        "g_emb_w": w((1, H)),        "g_emb_b": b((1, H)),     # QRNN(1, LSTM_SIZE)
        "g_emb_rec_w": w((H, H)),    "g_emb_rec_b": b((1, H)), # layer-0 re-embedding
        "qrnn_w": w((H, H)),         "qrnn_b": b((1, H)),      # shared QRNN body
        "w_attn_1_w": w((H, H)),     "w_attn_1_b": b((1, H)),
        "w_attn_2_w": w((H, H)),     "w_attn_2_b": b((1, H)),
        "v_attn_w": w((1, H)),       "v_attn_b": b((1, 1)),    # H -> 1 head (row layout)
        "start_w": w((NB, H, F)),    "start_b": b((NB, 1, F)),
        "start_emb": w((NB, F, H)),
        "count_w": w((NB, H, F)),    "count_b": b((NB, 1, F)),
        "count_emb": w((NB, F, H)),
    }


if __name__ == "__main__":
    key = jax.random.PRNGKey(0)
    pkey, xkey = jax.random.split(key)
    params = make_params(pkey)
    param_slab = pack_params(params)          # folded + packed once, off-device path

    # orig_inputs feeds g_emb = QRNN(1, LSTM_SIZE)  ->  shape [B, 1]
    orig_inputs = jax.random.normal(xkey, (BATCH, 1), jnp.float32)

    arc_actions, skips = controller_forward(orig_inputs, param_slab)
    arc_actions = jax.block_until_ready(arc_actions)
    for s in skips:
        jax.block_until_ready(s)

    assert arc_actions.shape == (BATCH, NUM_ACTIONS)
    assert arc_actions.dtype == jnp.int32
    assert bool(jnp.all((arc_actions >= 0) & (arc_actions <= OUT_FILTERS)))
    assert len(skips) == NUM_LAYERS - 1
    for l, s in enumerate(skips, start=1):
        assert s.shape == (BATCH, l)
        assert bool(jnp.all((s == 0) | (s == 1)))
    print("KERNEL_OK")
</pallas_src>

<mosaic_0001>
module attributes {stable_mosaic.version = 11 : i64} {
  func.func @_controller_kernel(%arg0: memref<2x1xf32, #tpu.memory_space<vmem>>, %arg1: memref<144x128xf32, #tpu.memory_space<vmem>>, %arg2: memref<2x12xi32, #tpu.memory_space<vmem>>, %arg3: memref<3x2x3xi32, #tpu.memory_space<vmem>>) attributes {dimension_semantics = [], scalar_prefetch = 0 : i64, scratch_operands = 0 : i64, tpu.core_type = #tpu.core_type<tc>} {
    %c0 = arith.constant 0 : index
    %c0_0 = arith.constant 0 : index
    %0 = vector.load %arg1[%c0, %c0_0] : memref<144x128xf32, #tpu.memory_space<vmem>>, vector<1x32xf32>
    %c1 = arith.constant 1 : index
    %c0_1 = arith.constant 0 : index
    %1 = vector.load %arg1[%c1, %c0_1] : memref<144x128xf32, #tpu.memory_space<vmem>>, vector<1x32xf32>
    %c2 = arith.constant 2 : index
    %c0_2 = arith.constant 0 : index
    %2 = vector.load %arg1[%c2, %c0_2] : memref<144x128xf32, #tpu.memory_space<vmem>>, vector<1x32xf32>
    %c3 = arith.constant 3 : index
    %c0_3 = arith.constant 0 : index
    %3 = vector.load %arg1[%c3, %c0_3] : memref<144x128xf32, #tpu.memory_space<vmem>>, vector<1x32xf32>
    %c4 = arith.constant 4 : index
    %c0_4 = arith.constant 0 : index
    %4 = vector.load %arg1[%c4, %c0_4] : memref<144x128xf32, #tpu.memory_space<vmem>>, vector<1x64xf32>
    %c5 = arith.constant 5 : index
    %c0_5 = arith.constant 0 : index
    %5 = vector.load %arg1[%c5, %c0_5] : memref<144x128xf32, #tpu.memory_space<vmem>>, vector<1x32xf32>
    %c6 = arith.constant 6 : index
    %c0_6 = arith.constant 0 : index
    %6 = vector.load %arg1[%c6, %c0_6] : memref<144x128xf32, #tpu.memory_space<vmem>>, vector<1x1xf32>
    %c8 = arith.constant 8 : index
    %c0_7 = arith.constant 0 : index
    %7 = vector.load %arg1[%c8, %c0_7] : memref<144x128xf32, #tpu.memory_space<vmem>>, vector<32x32xf32>
    %8 = arith.truncf %7 : vector<32x32xf32> to vector<32x32xbf16>
    %c40 = arith.constant 40 : index
    %c0_8 = arith.constant 0 : index
    %9 = vector.load %arg1[%c40, %c0_8] : memref<144x128xf32, #tpu.memory_space<vmem>>, vector<32x8xf32>
    %10 = arith.truncf %9 : vector<32x8xf32> to vector<32x8xbf16>
    %c72 = arith.constant 72 : index
    %c0_9 = arith.constant 0 : index
    %11 = vector.load %arg1[%c72, %c0_9] : memref<144x128xf32, #tpu.memory_space<vmem>>, vector<32x64xf32>
    %12 = arith.truncf %11 : vector<32x64xf32> to vector<32x64xbf16>
    %c104 = arith.constant 104 : index
    %c0_10 = arith.constant 0 : index
    %13 = vector.load %arg1[%c104, %c0_10] : memref<144x128xf32, #tpu.memory_space<vmem>>, vector<8x32xf32>
    %14 = arith.truncf %13 : vector<8x32xf32> to vector<8x32xbf16>
    %c112 = arith.constant 112 : index
    %c0_11 = arith.constant 0 : index
    %15 = vector.load %arg1[%c112, %c0_11] : memref<144x128xf32, #tpu.memory_space<vmem>>, vector<8x8xf32>
    %16 = arith.truncf %15 : vector<8x8xf32> to vector<8x8xbf16>
    %c120 = arith.constant 120 : index
    %c0_12 = arith.constant 0 : index
    %17 = vector.load %arg1[%c120, %c0_12] : memref<144x128xf32, #tpu.memory_space<vmem>>, vector<8x8xf32>
    %18 = arith.truncf %17 : vector<8x8xf32> to vector<8x8xbf16>
    %c128 = arith.constant 128 : index
    %c0_13 = arith.constant 0 : index
    %19 = vector.load %arg1[%c128, %c0_13] : memref<144x128xf32, #tpu.memory_space<vmem>>, vector<8x8xf32>
    %20 = arith.truncf %19 : vector<8x8xf32> to vector<8x8xbf16>
    %c136 = arith.constant 136 : index
    %c0_14 = arith.constant 0 : index
    %21 = vector.load %arg1[%c136, %c0_14] : memref<144x128xf32, #tpu.memory_space<vmem>>, vector<1x8xf32>
    %c137 = arith.constant 137 : index
    %c0_15 = arith.constant 0 : index
    %22 = vector.load %arg1[%c137, %c0_15] : memref<144x128xf32, #tpu.memory_space<vmem>>, vector<1x8xf32>
    %c138 = arith.constant 138 : index
    %c0_16 = arith.constant 0 : index
    %23 = vector.load %arg1[%c138, %c0_16] : memref<144x128xf32, #tpu.memory_space<vmem>>, vector<1x8xf32>
    %c139 = arith.constant 139 : index
    %c0_17 = arith.constant 0 : index
    %24 = vector.load %arg1[%c139, %c0_17] : memref<144x128xf32, #tpu.memory_space<vmem>>, vector<1x8xf32>
    %25 = tpu.iota {dimensions = array<i32: 1>} : vector<2x8xi32>
    %26 = tpu.iota {dimensions = array<i32: 1>} : vector<2x3xi32>
    %c0_18 = arith.constant 0 : index
    %c0_19 = arith.constant 0 : index
    %27 = vector.load %arg0[%c0_18, %c0_19] : memref<2x1xf32, #tpu.memory_space<vmem>>, vector<2x1xf32>
    %28 = vector.broadcast %27 : vector<2x1xf32> to vector<2x32xf32>
    %29 = vector.broadcast %0 : vector<1x32xf32> to vector<2x32xf32>
    %30 = arith.mulf %28, %29 : vector<2x32xf32>
    %31 = vector.broadcast %1 : vector<1x32xf32> to vector<2x32xf32>
    %32 = arith.addf %30, %31 : vector<2x32xf32>
    %33 = arith.truncf %32 : vector<2x32xf32> to vector<2x32xbf16>
    %cst = arith.constant dense<0.000000e+00> : vector<2x8xf32>
    %34 = tpu.matmul %33, %10, %cst {dimension_numbers = #tpu.dot_dimension_numbers<[1], [0], [0], [1], [0, 0, 1, 1], [], []>} : vector<2x32xbf16>, vector<32x8xbf16>, vector<2x8xf32> -> vector<2x8xf32>
    %35 = vector.broadcast %21 : vector<1x8xf32> to vector<2x8xf32>
    %36 = arith.addf %34, %35 : vector<2x8xf32>
    %cst_20 = arith.constant dense<0xFF800000> : vector<2xf32>
    %37 = vector.multi_reduction <maximumf>, %36, %cst_20 [1] : vector<2x8xf32> to vector<2xf32>
    %38 = vector.shape_cast %37 : vector<2xf32> to vector<2x1xf32>
    %39 = vector.broadcast %38 : vector<2x1xf32> to vector<2x8xf32>
    %40 = arith.cmpf oeq, %36, %39 : vector<2x8xf32>
    %41 = arith.extui %40 : vector<2x8xi1> to vector<2x8xi32>
    %42 = arith.sitofp %41 : vector<2x8xi32> to vector<2x8xf32>
    %43 = arith.truncf %42 : vector<2x8xf32> to vector<2x8xbf16>
    %c8_i32 = arith.constant 8 : i32
    %44 = vector.broadcast %c8_i32 : i32 to vector<2x8xi32>
    %45 = arith.select %40, %25, %44 : vector<2x8xi1>, vector<2x8xi32>
    %cst_21 = arith.constant dense<2147483647> : vector<2xi32>
    %46 = vector.multi_reduction <minsi>, %45, %cst_21 [1] : vector<2x8xi32> to vector<2xi32>
    %47 = vector.shape_cast %46 : vector<2xi32> to vector<2x1xi32>
    %cst_22 = arith.constant dense<0.000000e+00> : vector<2x8xf32>
    %48 = tpu.matmul %43, %16, %cst_22 {dimension_numbers = #tpu.dot_dimension_numbers<[1], [0], [0], [1], [0, 0, 1, 1], [], []>} : vector<2x8xbf16>, vector<8x8xbf16>, vector<2x8xf32> -> vector<2x8xf32>
    %49 = vector.broadcast %22 : vector<1x8xf32> to vector<2x8xf32>
    %50 = arith.addf %48, %49 : vector<2x8xf32>
    %cst_23 = arith.constant dense<0xFF800000> : vector<2xf32>
    %51 = vector.multi_reduction <maximumf>, %50, %cst_23 [1] : vector<2x8xf32> to vector<2xf32>
    %52 = vector.shape_cast %51 : vector<2xf32> to vector<2x1xf32>
    %53 = vector.broadcast %52 : vector<2x1xf32> to vector<2x8xf32>
    %54 = arith.cmpf oeq, %50, %53 : vector<2x8xf32>
    %55 = arith.extui %54 : vector<2x8xi1> to vector<2x8xi32>
    %56 = arith.sitofp %55 : vector<2x8xi32> to vector<2x8xf32>
    %57 = arith.truncf %56 : vector<2x8xf32> to vector<2x8xbf16>
    %c8_i32_24 = arith.constant 8 : i32
    %58 = vector.broadcast %c8_i32_24 : i32 to vector<2x8xi32>
    %59 = arith.select %54, %25, %58 : vector<2x8xi1>, vector<2x8xi32>
    %cst_25 = arith.constant dense<2147483647> : vector<2xi32>
    %60 = vector.multi_reduction <minsi>, %59, %cst_25 [1] : vector<2x8xi32> to vector<2xi32>
    %61 = vector.shape_cast %60 : vector<2xi32> to vector<2x1xi32>
    %c1_i32 = arith.constant 1 : i32
    %62 = vector.broadcast %c1_i32 : i32 to vector<2x1xi32>
    %63 = arith.addi %61, %62 : vector<2x1xi32>
    %cst_26 = arith.constant dense<0.000000e+00> : vector<2x8xf32>
    %64 = tpu.matmul %57, %18, %cst_26 {dimension_numbers = #tpu.dot_dimension_numbers<[1], [0], [0], [1], [0, 0, 1, 1], [], []>} : vector<2x8xbf16>, vector<8x8xbf16>, vector<2x8xf32> -> vector<2x8xf32>
    %65 = vector.broadcast %23 : vector<1x8xf32> to vector<2x8xf32>
    %66 = arith.addf %64, %65 : vector<2x8xf32>
    %cst_27 = arith.constant dense<0xFF800000> : vector<2xf32>
    %67 = vector.multi_reduction <maximumf>, %66, %cst_27 [1] : vector<2x8xf32> to vector<2xf32>
    %68 = vector.shape_cast %67 : vector<2xf32> to vector<2x1xf32>
    %69 = vector.broadcast %68 : vector<2x1xf32> to vector<2x8xf32>
    %70 = arith.cmpf oeq, %66, %69 : vector<2x8xf32>
    %71 = arith.extui %70 : vector<2x8xi1> to vector<2x8xi32>
    %72 = arith.sitofp %71 : vector<2x8xi32> to vector<2x8xf32>
    %73 = arith.truncf %72 : vector<2x8xf32> to vector<2x8xbf16>
    %c8_i32_28 = arith.constant 8 : i32
    %74 = vector.broadcast %c8_i32_28 : i32 to vector<2x8xi32>
    %75 = arith.select %70, %25, %74 : vector<2x8xi1>, vector<2x8xi32>
    %cst_29 = arith.constant dense<2147483647> : vector<2xi32>
    %76 = vector.multi_reduction <minsi>, %75, %cst_29 [1] : vector<2x8xi32> to vector<2xi32>
    %77 = vector.shape_cast %76 : vector<2xi32> to vector<2x1xi32>
    %c0_i32 = arith.constant 0 : i32
    %78 = vector.broadcast %c0_i32 : i32 to vector<2x1xi32>
    %79 = arith.addi %77, %78 : vector<2x1xi32>
    %cst_30 = arith.constant dense<0.000000e+00> : vector<2x8xf32>
    %80 = tpu.matmul %73, %20, %cst_30 {dimension_numbers = #tpu.dot_dimension_numbers<[1], [0], [0], [1], [0, 0, 1, 1], [], []>} : vector<2x8xbf16>, vector<8x8xbf16>, vector<2x8xf32> -> vector<2x8xf32>
    %81 = vector.broadcast %24 : vector<1x8xf32> to vector<2x8xf32>
    %82 = arith.addf %80, %81 : vector<2x8xf32>
    %cst_31 = arith.constant dense<0xFF800000> : vector<2xf32>
    %83 = vector.multi_reduction <maximumf>, %82, %cst_31 [1] : vector<2x8xf32> to vector<2xf32>
    %84 = vector.shape_cast %83 : vector<2xf32> to vector<2x1xf32>
    %85 = vector.broadcast %84 : vector<2x1xf32> to vector<2x8xf32>
    %86 = arith.cmpf oeq, %82, %85 : vector<2x8xf32>
    %87 = arith.extui %86 : vector<2x8xi1> to vector<2x8xi32>
    %88 = arith.sitofp %87 : vector<2x8xi32> to vector<2x8xf32>
    %89 = arith.truncf %88 : vector<2x8xf32> to vector<2x8xbf16>
    %c8_i32_32 = arith.constant 8 : i32
    %90 = vector.broadcast %c8_i32_32 : i32 to vector<2x8xi32>
    %91 = arith.select %86, %25, %90 : vector<2x8xi1>, vector<2x8xi32>
    %cst_33 = arith.constant dense<2147483647> : vector<2xi32>
    %92 = vector.multi_reduction <minsi>, %91, %cst_33 [1] : vector<2x8xi32> to vector<2xi32>
    %93 = vector.shape_cast %92 : vector<2xi32> to vector<2x1xi32>
    %c1_i32_34 = arith.constant 1 : i32
    %94 = vector.broadcast %c1_i32_34 : i32 to vector<2x1xi32>
    %95 = arith.addi %93, %94 : vector<2x1xi32>
    %cst_35 = arith.constant dense<0.000000e+00> : vector<2x32xf32>
    %96 = tpu.matmul %89, %14, %cst_35 {dimension_numbers = #tpu.dot_dimension_numbers<[1], [0], [0], [1], [0, 0, 1, 1], [], []>} : vector<2x8xbf16>, vector<8x32xbf16>, vector<2x32xf32> -> vector<2x32xf32>
    %97 = vector.broadcast %3 : vector<1x32xf32> to vector<2x32xf32>
    %98 = arith.addf %96, %97 : vector<2x32xf32>
    %99 = arith.truncf %98 : vector<2x32xf32> to vector<2x32xbf16>
    %cst_36 = arith.constant dense<0.000000e+00> : vector<2x64xf32>
    %100 = tpu.matmul %99, %12, %cst_36 {dimension_numbers = #tpu.dot_dimension_numbers<[1], [0], [0], [1], [0, 0, 1, 1], [], []>} : vector<2x32xbf16>, vector<32x64xbf16>, vector<2x64xf32> -> vector<2x64xf32>
    %101 = vector.broadcast %4 : vector<1x64xf32> to vector<2x64xf32>
    %102 = arith.addf %100, %101 : vector<2x64xf32>
    %103 = vector.extract_strided_slice %102 {offsets = [0, 0], sizes = [2, 32], strides = [1, 1]} : vector<2x64xf32> to vector<2x32xf32>
    %c0_i32_37 = arith.constant 0 : i32
    %104 = vector.broadcast %c0_i32_37 : i32 to vector<2x3xi32>
    %c0_38 = arith.constant 0 : index
    %c0_39 = arith.constant 0 : index
    %c0_40 = arith.constant 0 : index
    %105 = vector.load %arg3[%c0_38, %c0_39, %c0_40] : memref<3x2x3xi32, #tpu.memory_space<vmem>>, vector<1x2x3xi32>
    %106 = vector.shape_cast %105 : vector<1x2x3xi32> to vector<2x3xi32>
    %107 = vector.shape_cast %104 : vector<2x3xi32> to vector<1x2x3xi32>
    tpu.vector_store %arg3[%c0_38, %c0_39, %c0_40], %107 {strides = array<i32>} : memref<3x2x3xi32, #tpu.memory_space<vmem>>, vector<1x2x3xi32>,
    %108 = arith.truncf %98 : vector<2x32xf32> to vector<2x32xbf16>
    %cst_41 = arith.constant dense<0.000000e+00> : vector<2x32xf32>
    %109 = tpu.matmul %108, %8, %cst_41 {dimension_numbers = #tpu.dot_dimension_numbers<[1], [0], [0], [1], [0, 0, 1, 1], [], []>} : vector<2x32xbf16>, vector<32x32xbf16>, vector<2x32xf32> -> vector<2x32xf32>
    %110 = vector.broadcast %2 : vector<1x32xf32> to vector<2x32xf32>
    %111 = arith.addf %109, %110 : vector<2x32xf32>
    %112 = arith.truncf %111 : vector<2x32xf32> to vector<2x32xbf16>
    %cst_42 = arith.constant dense<0.000000e+00> : vector<2x8xf32>
    %113 = tpu.matmul %112, %10, %cst_42 {dimension_numbers = #tpu.dot_dimension_numbers<[1], [0], [0], [1], [0, 0, 1, 1], [], []>} : vector<2x32xbf16>, vector<32x8xbf16>, vector<2x8xf32> -> vector<2x8xf32>
    %114 = vector.broadcast %21 : vector<1x8xf32> to vector<2x8xf32>
    %115 = arith.addf %113, %114 : vector<2x8xf32>
    %cst_43 = arith.constant dense<0xFF800000> : vector<2xf32>
    %116 = vector.multi_reduction <maximumf>, %115, %cst_43 [1] : vector<2x8xf32> to vector<2xf32>
    %117 = vector.shape_cast %116 : vector<2xf32> to vector<2x1xf32>
    %118 = vector.broadcast %117 : vector<2x1xf32> to vector<2x8xf32>
    %119 = arith.cmpf oeq, %115, %118 : vector<2x8xf32>
    %120 = arith.extui %119 : vector<2x8xi1> to vector<2x8xi32>
    %121 = arith.sitofp %120 : vector<2x8xi32> to vector<2x8xf32>
    %122 = arith.truncf %121 : vector<2x8xf32> to vector<2x8xbf16>
    %c8_i32_44 = arith.constant 8 : i32
    %123 = vector.broadcast %c8_i32_44 : i32 to vector<2x8xi32>
    %124 = arith.select %119, %25, %123 : vector<2x8xi1>, vector<2x8xi32>
    %cst_45 = arith.constant dense<2147483647> : vector<2xi32>
    %125 = vector.multi_reduction <minsi>, %124, %cst_45 [1] : vector<2x8xi32> to vector<2xi32>
    %126 = vector.shape_cast %125 : vector<2xi32> to vector<2x1xi32>
    %cst_46 = arith.constant dense<0.000000e+00> : vector<2x8xf32>
    %127 = tpu.matmul %122, %16, %cst_46 {dimension_numbers = #tpu.dot_dimension_numbers<[1], [0], [0], [1], [0, 0, 1, 1], [], []>} : vector<2x8xbf16>, vector<8x8xbf16>, vector<2x8xf32> -> vector<2x8xf32>
    %128 = vector.broadcast %22 : vector<1x8xf32> to vector<2x8xf32>
    %129 = arith.addf %127, %128 : vector<2x8xf32>
    %cst_47 = arith.constant dense<0xFF800000> : vector<2xf32>
    %130 = vector.multi_reduction <maximumf>, %129, %cst_47 [1] : vector<2x8xf32> to vector<2xf32>
    %131 = vector.shape_cast %130 : vector<2xf32> to vector<2x1xf32>
    %132 = vector.broadcast %131 : vector<2x1xf32> to vector<2x8xf32>
    %133 = arith.cmpf oeq, %129, %132 : vector<2x8xf32>
    %134 = arith.extui %133 : vector<2x8xi1> to vector<2x8xi32>
    %135 = arith.sitofp %134 : vector<2x8xi32> to vector<2x8xf32>
    %136 = arith.truncf %135 : vector<2x8xf32> to vector<2x8xbf16>
    %c8_i32_48 = arith.constant 8 : i32
    %137 = vector.broadcast %c8_i32_48 : i32 to vector<2x8xi32>
    %138 = arith.select %133, %25, %137 : vector<2x8xi1>, vector<2x8xi32>
    %cst_49 = arith.constant dense<2147483647> : vector<2xi32>
    %139 = vector.multi_reduction <minsi>, %138, %cst_49 [1] : vector<2x8xi32> to vector<2xi32>
    %140 = vector.shape_cast %139 : vector<2xi32> to vector<2x1xi32>
    %c1_i32_50 = arith.constant 1 : i32
    %141 = vector.broadcast %c1_i32_50 : i32 to vector<2x1xi32>
    %142 = arith.addi %140, %141 : vector<2x1xi32>
    %cst_51 = arith.constant dense<0.000000e+00> : vector<2x8xf32>
    %143 = tpu.matmul %136, %18, %cst_51 {dimension_numbers = #tpu.dot_dimension_numbers<[1], [0], [0], [1], [0, 0, 1, 1], [], []>} : vector<2x8xbf16>, vector<8x8xbf16>, vector<2x8xf32> -> vector<2x8xf32>
    %144 = vector.broadcast %23 : vector<1x8xf32> to vector<2x8xf32>
    %145 = arith.addf %143, %144 : vector<2x8xf32>
    %cst_52 = arith.constant dense<0xFF800000> : vector<2xf32>
    %146 = vector.multi_reduction <maximumf>, %145, %cst_52 [1] : vector<2x8xf32> to vector<2xf32>
    %147 = vector.shape_cast %146 : vector<2xf32> to vector<2x1xf32>
    %148 = vector.broadcast %147 : vector<2x1xf32> to vector<2x8xf32>
    %149 = arith.cmpf oeq, %145, %148 : vector<2x8xf32>
    %150 = arith.extui %149 : vector<2x8xi1> to vector<2x8xi32>
    %151 = arith.sitofp %150 : vector<2x8xi32> to vector<2x8xf32>
    %152 = arith.truncf %151 : vector<2x8xf32> to vector<2x8xbf16>
    %c8_i32_53 = arith.constant 8 : i32
    %153 = vector.broadcast %c8_i32_53 : i32 to vector<2x8xi32>
    %154 = arith.select %149, %25, %153 : vector<2x8xi1>, vector<2x8xi32>
    %cst_54 = arith.constant dense<2147483647> : vector<2xi32>
    %155 = vector.multi_reduction <minsi>, %154, %cst_54 [1] : vector<2x8xi32> to vector<2xi32>
    %156 = vector.shape_cast %155 : vector<2xi32> to vector<2x1xi32>
    %c0_i32_55 = arith.constant 0 : i32
    %157 = vector.broadcast %c0_i32_55 : i32 to vector<2x1xi32>
    %158 = arith.addi %156, %157 : vector<2x1xi32>
    %cst_56 = arith.constant dense<0.000000e+00> : vector<2x8xf32>
    %159 = tpu.matmul %152, %20, %cst_56 {dimension_numbers = #tpu.dot_dimension_numbers<[1], [0], [0], [1], [0, 0, 1, 1], [], []>} : vector<2x8xbf16>, vector<8x8xbf16>, vector<2x8xf32> -> vector<2x8xf32>
    %160 = vector.broadcast %24 : vector<1x8xf32> to vector<2x8xf32>
    %161 = arith.addf %159, %160 : vector<2x8xf32>
    %cst_57 = arith.constant dense<0xFF800000> : vector<2xf32>
    %162 = vector.multi_reduction <maximumf>, %161, %cst_57 [1] : vector<2x8xf32> to vector<2xf32>
    %163 = vector.shape_cast %162 : vector<2xf32> to vector<2x1xf32>
    %164 = vector.broadcast %163 : vector<2x1xf32> to vector<2x8xf32>
    %165 = arith.cmpf oeq, %161, %164 : vector<2x8xf32>
    %166 = arith.extui %165 : vector<2x8xi1> to vector<2x8xi32>
    %167 = arith.sitofp %166 : vector<2x8xi32> to vector<2x8xf32>
    %168 = arith.truncf %167 : vector<2x8xf32> to vector<2x8xbf16>
    %c8_i32_58 = arith.constant 8 : i32
    %169 = vector.broadcast %c8_i32_58 : i32 to vector<2x8xi32>
    %170 = arith.select %165, %25, %169 : vector<2x8xi1>, vector<2x8xi32>
    %cst_59 = arith.constant dense<2147483647> : vector<2xi32>
    %171 = vector.multi_reduction <minsi>, %170, %cst_59 [1] : vector<2x8xi32> to vector<2xi32>
    %172 = vector.shape_cast %171 : vector<2xi32> to vector<2x1xi32>
    %c1_i32_60 = arith.constant 1 : i32
    %173 = vector.broadcast %c1_i32_60 : i32 to vector<2x1xi32>
    %174 = arith.addi %172, %173 : vector<2x1xi32>
    %cst_61 = arith.constant dense<0.000000e+00> : vector<2x32xf32>
    %175 = tpu.matmul %168, %14, %cst_61 {dimension_numbers = #tpu.dot_dimension_numbers<[1], [0], [0], [1], [0, 0, 1, 1], [], []>} : vector<2x8xbf16>, vector<8x32xbf16>, vector<2x32xf32> -> vector<2x32xf32>
    %176 = vector.broadcast %3 : vector<1x32xf32> to vector<2x32xf32>
    %177 = arith.addf %175, %176 : vector<2x32xf32>
    %178 = arith.truncf %177 : vector<2x32xf32> to vector<2x32xbf16>
    %cst_62 = arith.constant dense<0.000000e+00> : vector<2x64xf32>
    %179 = tpu.matmul %178, %12, %cst_62 {dimension_numbers = #tpu.dot_dimension_numbers<[1], [0], [0], [1], [0, 0, 1, 1], [], []>} : vector<2x32xbf16>, vector<32x64xbf16>, vector<2x64xf32> -> vector<2x64xf32>
    %180 = vector.broadcast %4 : vector<1x64xf32> to vector<2x64xf32>
    %181 = arith.addf %179, %180 : vector<2x64xf32>
    %182 = vector.extract_strided_slice %181 {offsets = [0, 0], sizes = [2, 32], strides = [1, 1]} : vector<2x64xf32> to vector<2x32xf32>
    %183 = vector.extract_strided_slice %181 {offsets = [0, 32], sizes = [2, 32], strides = [1, 1]} : vector<2x64xf32> to vector<2x32xf32>
    %cst_63 = arith.constant 0.000000e+00 : f32
    %184 = vector.broadcast %cst_63 : f32 to vector<2x32xf32>
    %c0_i32_64 = arith.constant 0 : i32
    %185 = vector.broadcast %c0_i32_64 : i32 to vector<2x3xi32>
    %186 = arith.addf %103, %183 : vector<2x32xf32>
    %187 = math.tanh %186 : vector<2x32xf32>
    %188 = vector.broadcast %5 : vector<1x32xf32> to vector<2x32xf32>
    %189 = arith.mulf %187, %188 : vector<2x32xf32>
    %cst_65 = arith.constant dense<0.000000e+00> : vector<2xf32>
    %190 = vector.multi_reduction <add>, %189, %cst_65 [1] : vector<2x32xf32> to vector<2xf32>
    %191 = vector.shape_cast %190 : vector<2xf32> to vector<2x1xf32>
    %192 = vector.broadcast %6 : vector<1x1xf32> to vector<2x1xf32>
    %193 = arith.addf %191, %192 : vector<2x1xf32>
    %cst_66 = arith.constant 0.000000e+00 : f32
    %194 = vector.broadcast %cst_66 : f32 to vector<2x1xf32>
    %195 = arith.cmpf ogt, %193, %194 : vector<2x1xf32>
    %cst_67 = arith.constant 0.000000e+00 : f32
    %196 = vector.shape_cast %195 : vector<2x1xi1> to vector<2x1xi1>
    %197 = vector.broadcast %196 : vector<2x1xi1> to vector<2x32xi1>
    %198 = vector.broadcast %cst_67 : f32 to vector<2x32xf32>
    %199 = arith.select %197, %98, %198 : vector<2x32xi1>, vector<2x32xf32>
    %200 = arith.addf %184, %199 : vector<2x32xf32>
    %c0_i32_68 = arith.constant 0 : i32
    %201 = vector.broadcast %c0_i32_68 : i32 to vector<2x3xi32>
    %202 = arith.cmpi eq, %26, %201 : vector<2x3xi32>
    %203 = arith.extui %202 : vector<2x3xi1> to vector<2x3xi32>
    %204 = arith.extui %195 : vector<2x1xi1> to vector<2x1xi32>
    %205 = vector.broadcast %204 : vector<2x1xi32> to vector<2x3xi32>
    %206 = arith.muli %203, %205 : vector<2x3xi32>
    %207 = arith.addi %185, %206 : vector<2x3xi32>
    %c1_69 = arith.constant 1 : index
    %c0_70 = arith.constant 0 : index
    %c0_71 = arith.constant 0 : index
    %208 = vector.load %arg3[%c1_69, %c0_70, %c0_71] : memref<3x2x3xi32, #tpu.memory_space<vmem>>, vector<1x2x3xi32>
    %209 = vector.shape_cast %208 : vector<1x2x3xi32> to vector<2x3xi32>
    %210 = vector.shape_cast %207 : vector<2x3xi32> to vector<1x2x3xi32>
    tpu.vector_store %arg3[%c1_69, %c0_70, %c0_71], %210 {strides = array<i32>} : memref<3x2x3xi32, #tpu.memory_space<vmem>>, vector<1x2x3xi32>,
    %211 = arith.truncf %200 : vector<2x32xf32> to vector<2x32xbf16>
    %cst_72 = arith.constant dense<0.000000e+00> : vector<2x8xf32>
    %212 = tpu.matmul %211, %10, %cst_72 {dimension_numbers = #tpu.dot_dimension_numbers<[1], [0], [0], [1], [0, 0, 1, 1], [], []>} : vector<2x32xbf16>, vector<32x8xbf16>, vector<2x8xf32> -> vector<2x8xf32>
    %213 = vector.broadcast %21 : vector<1x8xf32> to vector<2x8xf32>
    %214 = arith.addf %212, %213 : vector<2x8xf32>
    %cst_73 = arith.constant dense<0xFF800000> : vector<2xf32>
    %215 = vector.multi_reduction <maximumf>, %214, %cst_73 [1] : vector<2x8xf32> to vector<2xf32>
    %216 = vector.shape_cast %215 : vector<2xf32> to vector<2x1xf32>
    %217 = vector.broadcast %216 : vector<2x1xf32> to vector<2x8xf32>
    %218 = arith.cmpf oeq, %214, %217 : vector<2x8xf32>
    %219 = arith.extui %218 : vector<2x8xi1> to vector<2x8xi32>
    %220 = arith.sitofp %219 : vector<2x8xi32> to vector<2x8xf32>
    %221 = arith.truncf %220 : vector<2x8xf32> to vector<2x8xbf16>
    %c8_i32_74 = arith.constant 8 : i32
    %222 = vector.broadcast %c8_i32_74 : i32 to vector<2x8xi32>
    %223 = arith.select %218, %25, %222 : vector<2x8xi1>, vector<2x8xi32>
    %cst_75 = arith.constant dense<2147483647> : vector<2xi32>
    %224 = vector.multi_reduction <minsi>, %223, %cst_75 [1] : vector<2x8xi32> to vector<2xi32>
    %225 = vector.shape_cast %224 : vector<2xi32> to vector<2x1xi32>
    %cst_76 = arith.constant dense<0.000000e+00> : vector<2x8xf32>
    %226 = tpu.matmul %221, %16, %cst_76 {dimension_numbers = #tpu.dot_dimension_numbers<[1], [0], [0], [1], [0, 0, 1, 1], [], []>} : vector<2x8xbf16>, vector<8x8xbf16>, vector<2x8xf32> -> vector<2x8xf32>
    %227 = vector.broadcast %22 : vector<1x8xf32> to vector<2x8xf32>
    %228 = arith.addf %226, %227 : vector<2x8xf32>
    %cst_77 = arith.constant dense<0xFF800000> : vector<2xf32>
    %229 = vector.multi_reduction <maximumf>, %228, %cst_77 [1] : vector<2x8xf32> to vector<2xf32>
    %230 = vector.shape_cast %229 : vector<2xf32> to vector<2x1xf32>
    %231 = vector.broadcast %230 : vector<2x1xf32> to vector<2x8xf32>
    %232 = arith.cmpf oeq, %228, %231 : vector<2x8xf32>
    %233 = arith.extui %232 : vector<2x8xi1> to vector<2x8xi32>
    %234 = arith.sitofp %233 : vector<2x8xi32> to vector<2x8xf32>
    %235 = arith.truncf %234 : vector<2x8xf32> to vector<2x8xbf16>
    %c8_i32_78 = arith.constant 8 : i32
    %236 = vector.broadcast %c8_i32_78 : i32 to vector<2x8xi32>
    %237 = arith.select %232, %25, %236 : vector<2x8xi1>, vector<2x8xi32>
    %cst_79 = arith.constant dense<2147483647> : vector<2xi32>
    %238 = vector.multi_reduction <minsi>, %237, %cst_79 [1] : vector<2x8xi32> to vector<2xi32>
    %239 = vector.shape_cast %238 : vector<2xi32> to vector<2x1xi32>
    %c1_i32_80 = arith.constant 1 : i32
    %240 = vector.broadcast %c1_i32_80 : i32 to vector<2x1xi32>
    %241 = arith.addi %239, %240 : vector<2x1xi32>
    %cst_81 = arith.constant dense<0.000000e+00> : vector<2x8xf32>
    %242 = tpu.matmul %235, %18, %cst_81 {dimension_numbers = #tpu.dot_dimension_numbers<[1], [0], [0], [1], [0, 0, 1, 1], [], []>} : vector<2x8xbf16>, vector<8x8xbf16>, vector<2x8xf32> -> vector<2x8xf32>
    %243 = vector.broadcast %23 : vector<1x8xf32> to vector<2x8xf32>
    %244 = arith.addf %242, %243 : vector<2x8xf32>
    %cst_82 = arith.constant dense<0xFF800000> : vector<2xf32>
    %245 = vector.multi_reduction <maximumf>, %244, %cst_82 [1] : vector<2x8xf32> to vector<2xf32>
    %246 = vector.shape_cast %245 : vector<2xf32> to vector<2x1xf32>
    %247 = vector.broadcast %246 : vector<2x1xf32> to vector<2x8xf32>
    %248 = arith.cmpf oeq, %244, %247 : vector<2x8xf32>
    %249 = arith.extui %248 : vector<2x8xi1> to vector<2x8xi32>
    %250 = arith.sitofp %249 : vector<2x8xi32> to vector<2x8xf32>
    %251 = arith.truncf %250 : vector<2x8xf32> to vector<2x8xbf16>
    %c8_i32_83 = arith.constant 8 : i32
    %252 = vector.broadcast %c8_i32_83 : i32 to vector<2x8xi32>
    %253 = arith.select %248, %25, %252 : vector<2x8xi1>, vector<2x8xi32>
    %cst_84 = arith.constant dense<2147483647> : vector<2xi32>
    %254 = vector.multi_reduction <minsi>, %253, %cst_84 [1] : vector<2x8xi32> to vector<2xi32>
    %255 = vector.shape_cast %254 : vector<2xi32> to vector<2x1xi32>
    %c0_i32_85 = arith.constant 0 : i32
    %256 = vector.broadcast %c0_i32_85 : i32 to vector<2x1xi32>
    %257 = arith.addi %255, %256 : vector<2x1xi32>
    %cst_86 = arith.constant dense<0.000000e+00> : vector<2x8xf32>
    %258 = tpu.matmul %251, %20, %cst_86 {dimension_numbers = #tpu.dot_dimension_numbers<[1], [0], [0], [1], [0, 0, 1, 1], [], []>} : vector<2x8xbf16>, vector<8x8xbf16>, vector<2x8xf32> -> vector<2x8xf32>
    %259 = vector.broadcast %24 : vector<1x8xf32> to vector<2x8xf32>
    %260 = arith.addf %258, %259 : vector<2x8xf32>
    %cst_87 = arith.constant dense<0xFF800000> : vector<2xf32>
    %261 = vector.multi_reduction <maximumf>, %260, %cst_87 [1] : vector<2x8xf32> to vector<2xf32>
    %262 = vector.shape_cast %261 : vector<2xf32> to vector<2x1xf32>
    %263 = vector.broadcast %262 : vector<2x1xf32> to vector<2x8xf32>
    %264 = arith.cmpf oeq, %260, %263 : vector<2x8xf32>
    %265 = arith.extui %264 : vector<2x8xi1> to vector<2x8xi32>
    %266 = arith.sitofp %265 : vector<2x8xi32> to vector<2x8xf32>
    %267 = arith.truncf %266 : vector<2x8xf32> to vector<2x8xbf16>
    %c8_i32_88 = arith.constant 8 : i32
    %268 = vector.broadcast %c8_i32_88 : i32 to vector<2x8xi32>
    %269 = arith.select %264, %25, %268 : vector<2x8xi1>, vector<2x8xi32>
    %cst_89 = arith.constant dense<2147483647> : vector<2xi32>
    %270 = vector.multi_reduction <minsi>, %269, %cst_89 [1] : vector<2x8xi32> to vector<2xi32>
    %271 = vector.shape_cast %270 : vector<2xi32> to vector<2x1xi32>
    %c1_i32_90 = arith.constant 1 : i32
    %272 = vector.broadcast %c1_i32_90 : i32 to vector<2x1xi32>
    %273 = arith.addi %271, %272 : vector<2x1xi32>
    %cst_91 = arith.constant dense<0.000000e+00> : vector<2x32xf32>
    %274 = tpu.matmul %267, %14, %cst_91 {dimension_numbers = #tpu.dot_dimension_numbers<[1], [0], [0], [1], [0, 0, 1, 1], [], []>} : vector<2x8xbf16>, vector<8x32xbf16>, vector<2x32xf32> -> vector<2x32xf32>
    %275 = vector.broadcast %3 : vector<1x32xf32> to vector<2x32xf32>
    %276 = arith.addf %274, %275 : vector<2x32xf32>
    %277 = arith.truncf %276 : vector<2x32xf32> to vector<2x32xbf16>
    %cst_92 = arith.constant dense<0.000000e+00> : vector<2x64xf32>
    %278 = tpu.matmul %277, %12, %cst_92 {dimension_numbers = #tpu.dot_dimension_numbers<[1], [0], [0], [1], [0, 0, 1, 1], [], []>} : vector<2x32xbf16>, vector<32x64xbf16>, vector<2x64xf32> -> vector<2x64xf32>
    %279 = vector.broadcast %4 : vector<1x64xf32> to vector<2x64xf32>
    %280 = arith.addf %278, %279 : vector<2x64xf32>
    %281 = vector.extract_strided_slice %280 {offsets = [0, 32], sizes = [2, 32], strides = [1, 1]} : vector<2x64xf32> to vector<2x32xf32>
    %c0_i32_93 = arith.constant 0 : i32
    %282 = vector.broadcast %c0_i32_93 : i32 to vector<2x3xi32>
    %283 = arith.addf %103, %281 : vector<2x32xf32>
    %284 = math.tanh %283 : vector<2x32xf32>
    %285 = vector.broadcast %5 : vector<1x32xf32> to vector<2x32xf32>
    %286 = arith.mulf %284, %285 : vector<2x32xf32>
    %cst_94 = arith.constant dense<0.000000e+00> : vector<2xf32>
    %287 = vector.multi_reduction <add>, %286, %cst_94 [1] : vector<2x32xf32> to vector<2xf32>
    %288 = vector.shape_cast %287 : vector<2xf32> to vector<2x1xf32>
    %289 = vector.broadcast %6 : vector<1x1xf32> to vector<2x1xf32>
    %290 = arith.addf %288, %289 : vector<2x1xf32>
    %cst_95 = arith.constant 0.000000e+00 : f32
    %291 = vector.broadcast %cst_95 : f32 to vector<2x1xf32>
    %292 = arith.cmpf ogt, %290, %291 : vector<2x1xf32>
    %c0_i32_96 = arith.constant 0 : i32
    %293 = vector.broadcast %c0_i32_96 : i32 to vector<2x3xi32>
    %294 = arith.cmpi eq, %26, %293 : vector<2x3xi32>
    %295 = arith.extui %294 : vector<2x3xi1> to vector<2x3xi32>
    %296 = arith.extui %292 : vector<2x1xi1> to vector<2x1xi32>
    %297 = vector.broadcast %296 : vector<2x1xi32> to vector<2x3xi32>
    %298 = arith.muli %295, %297 : vector<2x3xi32>
    %299 = arith.addi %282, %298 : vector<2x3xi32>
    %300 = arith.addf %182, %281 : vector<2x32xf32>
    %301 = math.tanh %300 : vector<2x32xf32>
    %302 = vector.broadcast %5 : vector<1x32xf32> to vector<2x32xf32>
    %303 = arith.mulf %301, %302 : vector<2x32xf32>
    %cst_97 = arith.constant dense<0.000000e+00> : vector<2xf32>
    %304 = vector.multi_reduction <add>, %303, %cst_97 [1] : vector<2x32xf32> to vector<2xf32>
    %305 = vector.shape_cast %304 : vector<2xf32> to vector<2x1xf32>
    %306 = vector.broadcast %6 : vector<1x1xf32> to vector<2x1xf32>
    %307 = arith.addf %305, %306 : vector<2x1xf32>
    %cst_98 = arith.constant 0.000000e+00 : f32
    %308 = vector.broadcast %cst_98 : f32 to vector<2x1xf32>
    %309 = arith.cmpf ogt, %307, %308 : vector<2x1xf32>
    %c1_i32_99 = arith.constant 1 : i32
    %310 = vector.broadcast %c1_i32_99 : i32 to vector<2x3xi32>
    %311 = arith.cmpi eq, %26, %310 : vector<2x3xi32>
    %312 = arith.extui %311 : vector<2x3xi1> to vector<2x3xi32>
    %313 = arith.extui %309 : vector<2x1xi1> to vector<2x1xi32>
    %314 = vector.broadcast %313 : vector<2x1xi32> to vector<2x3xi32>
    %315 = arith.muli %312, %314 : vector<2x3xi32>
    %316 = arith.addi %299, %315 : vector<2x3xi32>
    %c2_100 = arith.constant 2 : index
    %c0_101 = arith.constant 0 : index
    %c0_102 = arith.constant 0 : index
    %317 = vector.load %arg3[%c2_100, %c0_101, %c0_102] : memref<3x2x3xi32, #tpu.memory_space<vmem>>, vector<1x2x3xi32>
    %318 = vector.shape_cast %317 : vector<1x2x3xi32> to vector<2x3xi32>
    %319 = vector.shape_cast %316 : vector<2x3xi32> to vector<1x2x3xi32>
    tpu.vector_store %arg3[%c2_100, %c0_101, %c0_102], %319 {strides = array<i32>} : memref<3x2x3xi32, #tpu.memory_space<vmem>>, vector<1x2x3xi32>,
    %320 = tpu.iota {dimensions = array<i32: 1>} : vector<2x12xi32>
    %c0_i32_103 = arith.constant 0 : i32
    %321 = vector.broadcast %c0_i32_103 : i32 to vector<2x12xi32>
    %c0_i32_104 = arith.constant 0 : i32
    %322 = vector.broadcast %c0_i32_104 : i32 to vector<2x12xi32>
    %323 = arith.cmpi eq, %320, %322 : vector<2x12xi32>
    %324 = arith.extui %323 : vector<2x12xi1> to vector<2x12xi32>
    %325 = vector.broadcast %47 : vector<2x1xi32> to vector<2x12xi32>
    %326 = arith.muli %324, %325 : vector<2x12xi32>
    %327 = arith.addi %321, %326 : vector<2x12xi32>
    %c1_i32_105 = arith.constant 1 : i32
    %328 = vector.broadcast %c1_i32_105 : i32 to vector<2x12xi32>
    %329 = arith.cmpi eq, %320, %328 : vector<2x12xi32>
    %330 = arith.extui %329 : vector<2x12xi1> to vector<2x12xi32>
    %331 = vector.broadcast %63 : vector<2x1xi32> to vector<2x12xi32>
    %332 = arith.muli %330, %331 : vector<2x12xi32>
    %333 = arith.addi %327, %332 : vector<2x12xi32>
    %c2_i32 = arith.constant 2 : i32
    %334 = vector.broadcast %c2_i32 : i32 to vector<2x12xi32>
    %335 = arith.cmpi eq, %320, %334 : vector<2x12xi32>
    %336 = arith.extui %335 : vector<2x12xi1> to vector<2x12xi32>
    %337 = vector.broadcast %79 : vector<2x1xi32> to vector<2x12xi32>
    %338 = arith.muli %336, %337 : vector<2x12xi32>
    %339 = arith.addi %333, %338 : vector<2x12xi32>
    %c3_i32 = arith.constant 3 : i32
    %340 = vector.broadcast %c3_i32 : i32 to vector<2x12xi32>
    %341 = arith.cmpi eq, %320, %340 : vector<2x12xi32>
    %342 = arith.extui %341 : vector<2x12xi1> to vector<2x12xi32>
    %343 = vector.broadcast %95 : vector<2x1xi32> to vector<2x12xi32>
    %344 = arith.muli %342, %343 : vector<2x12xi32>
    %345 = arith.addi %339, %344 : vector<2x12xi32>
    %c4_i32 = arith.constant 4 : i32
    %346 = vector.broadcast %c4_i32 : i32 to vector<2x12xi32>
    %347 = arith.cmpi eq, %320, %346 : vector<2x12xi32>
    %348 = arith.extui %347 : vector<2x12xi1> to vector<2x12xi32>
    %349 = vector.broadcast %126 : vector<2x1xi32> to vector<2x12xi32>
    %350 = arith.muli %348, %349 : vector<2x12xi32>
    %351 = arith.addi %345, %350 : vector<2x12xi32>
    %c5_i32 = arith.constant 5 : i32
    %352 = vector.broadcast %c5_i32 : i32 to vector<2x12xi32>
    %353 = arith.cmpi eq, %320, %352 : vector<2x12xi32>
    %354 = arith.extui %353 : vector<2x12xi1> to vector<2x12xi32>
    %355 = vector.broadcast %142 : vector<2x1xi32> to vector<2x12xi32>
    %356 = arith.muli %354, %355 : vector<2x12xi32>
    %357 = arith.addi %351, %356 : vector<2x12xi32>
    %c6_i32 = arith.constant 6 : i32
    %358 = vector.broadcast %c6_i32 : i32 to vector<2x12xi32>
    %359 = arith.cmpi eq, %320, %358 : vector<2x12xi32>
    %360 = arith.extui %359 : vector<2x12xi1> to vector<2x12xi32>
    %361 = vector.broadcast %158 : vector<2x1xi32> to vector<2x12xi32>
    %362 = arith.muli %360, %361 : vector<2x12xi32>
    %363 = arith.addi %357, %362 : vector<2x12xi32>
    %c7_i32 = arith.constant 7 : i32
    %364 = vector.broadcast %c7_i32 : i32 to vector<2x12xi32>
    %365 = arith.cmpi eq, %320, %364 : vector<2x12xi32>
    %366 = arith.extui %365 : vector<2x12xi1> to vector<2x12xi32>
    %367 = vector.broadcast %174 : vector<2x1xi32> to vector<2x12xi32>
    %368 = arith.muli %366, %367 : vector<2x12xi32>
    %369 = arith.addi %363, %368 : vector<2x12xi32>
    %c8_i32_106 = arith.constant 8 : i32
    %370 = vector.broadcast %c8_i32_106 : i32 to vector<2x12xi32>
    %371 = arith.cmpi eq, %320, %370 : vector<2x12xi32>
    %372 = arith.extui %371 : vector<2x12xi1> to vector<2x12xi32>
    %373 = vector.broadcast %225 : vector<2x1xi32> to vector<2x12xi32>
    %374 = arith.muli %372, %373 : vector<2x12xi32>
    %375 = arith.addi %369, %374 : vector<2x12xi32>
    %c9_i32 = arith.constant 9 : i32
    %376 = vector.broadcast %c9_i32 : i32 to vector<2x12xi32>
    %377 = arith.cmpi eq, %320, %376 : vector<2x12xi32>
    %378 = arith.extui %377 : vector<2x12xi1> to vector<2x12xi32>
    %379 = vector.broadcast %241 : vector<2x1xi32> to vector<2x12xi32>
    %380 = arith.muli %378, %379 : vector<2x12xi32>
    %381 = arith.addi %375, %380 : vector<2x12xi32>
    %c10_i32 = arith.constant 10 : i32
    %382 = vector.broadcast %c10_i32 : i32 to vector<2x12xi32>
    %383 = arith.cmpi eq, %320, %382 : vector<2x12xi32>
    %384 = arith.extui %383 : vector<2x12xi1> to vector<2x12xi32>
    %385 = vector.broadcast %257 : vector<2x1xi32> to vector<2x12xi32>
    %386 = arith.muli %384, %385 : vector<2x12xi32>
    %387 = arith.addi %381, %386 : vector<2x12xi32>
    %c11_i32 = arith.constant 11 : i32
    %388 = vector.broadcast %c11_i32 : i32 to vector<2x12xi32>
    %389 = arith.cmpi eq, %320, %388 : vector<2x12xi32>
    %390 = arith.extui %389 : vector<2x12xi1> to vector<2x12xi32>
    %391 = vector.broadcast %273 : vector<2x1xi32> to vector<2x12xi32>
    %392 = arith.muli %390, %391 : vector<2x12xi32>
    %393 = arith.addi %387, %392 : vector<2x12xi32>
    %c0_107 = arith.constant 0 : index
    %c0_108 = arith.constant 0 : index
    %394 = vector.load %arg2[%c0_107, %c0_108] : memref<2x12xi32, #tpu.memory_space<vmem>>, vector<2x12xi32>
    tpu.vector_store %arg2[%c0_107, %c0_108], %393 {strides = array<i32>} : memref<2x12xi32, #tpu.memory_space<vmem>>, vector<2x12xi32>,
    return
  }
}

</mosaic_0001>

<llo_original>
// kernel: controller_forward.1
$region0: #{controller_forward.1}
  #allocation0 [shape = 'u32[]', space=smem, size = 0x4, offset = 0x4, fixed_abs, tag = 'smem constant byte address 0x4 - core index']
  #allocation1 [shape = 'u32[144,128]{1,0:T(1,128)}', space=vmem, size = 0x12000, scoped, tag = 'internal scratch']
  %s0 = inlined_call_operand.vmem [shape: f32[2,1], index: 0, kind: input, shape index: {}]
  %s1 = inlined_call_operand.hbm [shape: f32[144,128], index: 1, kind: input, shape index: {}]
  %s2 = inlined_call_operand.hbm [shape: s32[2,12], index: 2, kind: output, shape index: {0}]
  %s3 = inlined_call_operand.vmem [shape: s32[3,2,3], index: 3, kind: output, shape index: {1}]
  %4 = xla_tuple %s2, %s3
  %s5 = sld [smem:[#allocation0]]
  $region30: #{controller_forward.1} parent=0
    _
  %s7 = ssub.s32 1, %s5
  %s8 = scalar_select 0, %s7, %s5
  $region1: #{controller_forward.1} parent=0
    #allocation2 [shape = 'u8[73728]{0}', space=vmem, size = 0x12000, scoped, tag = 'input window, operand 1, single buffered']
    #allocation3 [shape = 's32[1]{0}', space=sflag, size = 0x4, scoped, tag = 'scoped memory for controller_forward.1']
    #allocation4 [shape = 's32[1]{0}', space=sflag, size = 0x4, scoped, tag = 'scoped memory for controller_forward.1']
    #allocation5 [shape = 'u8[1024]{0}', space=vmem, size = 0x400, scoped, tag = 'output window, operand 0, single buffered']
    %9 = vsyncpa [#allocation3], 0
    %10 = vsyncpa [#allocation4], 0
    // Predicated region
    $region2: #{controller_forward.1} parent=1 // pred_check
      _
    $region3: #{controller_forward.1} parent=1 // pred_check_branch
      %12 = sbr.rel (0) target = $region5
    $region4: #{controller_forward.1} parent=1 // pred_region
      _
    $region5: #{controller_forward.1} parent=1 // pred_fallthru
      _
    // Predicated region
    $region6: #{controller_forward.1} parent=1 // pred_check
      _
    $region7: #{controller_forward.1} parent=1 // pred_check_branch
      %14 = sbr.rel (0) target = $region9
    $region8: #{controller_forward.1} parent=1 // pred_region
      %s16 = ssub.s32 2304, 2304
      %17 = vsyncadd [#allocation3], %s16
      %s18 = sshll.u32 [#allocation2], 4
      %s19 = int_to_ptr.vmem [resolvable:$true] %s18
      %24 = dma.hbm_to_vmem [thread:$0]  %s1, 2304, %s19, [#allocation3], 128, 128, 8
    $region9: #{controller_forward.1} parent=1 // pred_fallthru
      _
    // Predicated region
    $region10: #{controller_forward.1} parent=1 // pred_check
      _
    $region11: #{controller_forward.1} parent=1 // pred_check_branch
      %26 = sbr.rel (0) target = $region13
    $region12: #{controller_forward.1} parent=1 // pred_region
      %27 = dma.done [#allocation3], 2304
    $region13: #{controller_forward.1} parent=1 // pred_fallthru
      _
    %v29 = vld [vmem:[#allocation2] sm:$0x1]
    %v30 = vld [vmem:[#allocation2 + $0x1] sm:$0x1]
    %v31 = vld [vmem:[#allocation2 + $0x2] sm:$0x1]
    %v32 = vld [vmem:[#allocation2 + $0x3] sm:$0x1]
    %v33 = vld [vmem:[#allocation2 + $0x4] sm:$0x1]
    %v34 = vld [vmem:[#allocation2 + $0x5] sm:$0x1]
    %v35 = vld [vmem:[#allocation2 + $0x6] sm:$0x1]
    %v36 = vld [vmem:[#allocation2 + $0x8] sm:$0xff]
    %v37 = vld [vmem:[#allocation2 + $0x10] sm:$0xff]
    %v38 = vld [vmem:[#allocation2 + $0x18] sm:$0xff]
    %v39 = vld [vmem:[#allocation2 + $0x20] sm:$0xff]
    %v40 = vpack.c.bf16 %v37, %v36
    %v41 = vpack.c.bf16 %v39, %v38
    %v42 = vld [vmem:[#allocation2 + $0x28] sm:$0xff]
    %v43 = vld [vmem:[#allocation2 + $0x30] sm:$0xff]
    %v44 = vld [vmem:[#allocation2 + $0x38] sm:$0xff]
    %v45 = vld [vmem:[#allocation2 + $0x40] sm:$0xff]
    %v46 = vpack.c.bf16 %v43, %v42
    %v47 = vpack.c.bf16 %v45, %v44
    %v48 = vld [vmem:[#allocation2 + $0x48] sm:$0xff]
    %v49 = vld [vmem:[#allocation2 + $0x50] sm:$0xff]
    %v50 = vld [vmem:[#allocation2 + $0x58] sm:$0xff]
    %v51 = vld [vmem:[#allocation2 + $0x60] sm:$0xff]
    %v52 = vpack.c.bf16 %v49, %v48
    %v53 = vpack.c.bf16 %v51, %v50
    %v54 = vld [vmem:[#allocation2 + $0x68] sm:$0xff]
    %v55 = vpack.c.bf16 %v54, %v54
    %v56 = vld [vmem:[#allocation2 + $0x70] sm:$0xff]
    %v57 = vpack.c.bf16 %v56, %v56
    %v58 = vld [vmem:[#allocation2 + $0x78] sm:$0xff]
    %v59 = vpack.c.bf16 %v58, %v58
    %v60 = vld [vmem:[#allocation2 + $0x80] sm:$0xff]
    %v61 = vpack.c.bf16 %v60, %v60
    %v62 = vld [vmem:[#allocation2 + $0x88] sm:$0x1]
    %v63 = vld [vmem:[#allocation2 + $0x89] sm:$0x1]
    %v64 = vld [vmem:[#allocation2 + $0x8a] sm:$0x1]
    %v65 = vld [vmem:[#allocation2 + $0x8b] sm:$0x1]
    %v66 = vlaneseq
    %v67 = vand.u32 %v66, 127
    %v68 = vld [vmem:[%s0] sm:$0x3]
    %70 = vset.pattern.permute.xlu0 0
    %71 = vperm.xlu0 %70, %v68
    %v72 = vpop.permute.xlu0 %71
    %v74 = vlaneseq
    %v75 = vshrl.u32 %v74, 7
    %v76 = vsub.s32 0, %v75
    %v77 = vrot.slane %v29, %v76
    %v78 = vmul.f32 %v72, %v77
    %v79 = vlaneseq
    %v80 = vshrl.u32 %v79, 7
    %v81 = vsub.s32 0, %v80
    %v82 = vrot.slane %v30, %v81
    %v83 = vadd.f32 %v78, %v82
    %v84 = vpack.c.bf16 %v83, %v83
    %v85 = vlaneseq
    %v86 = vshrl.u32 %v85, 7
    %v87 = vsub.s32 0, %v86
    %v88 = vrot.slane %v62, %v87
    %vm89 = vcmask 261120
    %v91 = vsel %vm89, %v84, 0
    %93 = vmatprep.subr.bf16.mxu0 0
    %94 = vmatpush1.bf16.msra.mxu0 %v46
    %95 = vmatprep.subr.bf16.mxu0 0
    %96 = vmatpush1.bf16.msra.mxu0 %v47
    %97 = vmatprep.subr.bf16.mxu0 0
    %98 = vmatpush1.bf16.msra.mxu0 0
    %99 = vmatprep.subr.bf16.mxu0 0
    %100 = vmatpush1.bf16.msra.mxu0 0
    %101 = vmatprep.subr.bf16.mxu0 0
    %102 = vmatpush1.bf16.msra.mxu0 0
    %103 = vmatprep.subr.bf16.mxu0 0
    %104 = vmatpush1.bf16.msra.mxu0 0
    %105 = vmatprep.subr.bf16.mxu0 0
    %106 = vmatpush1.bf16.msra.mxu0 0
    %107 = vmatprep.subr.bf16.mxu0 0
    %108 = vmatpush1.bf16.msra.mxu0 0
    %109 = vmatprep.subr.bf16.mxu0 0
    %110 = vmatpush1.bf16.msra.mxu0 0
    %111 = vmatprep.subr.bf16.mxu0 0
    %112 = vmatpush1.bf16.msra.mxu0 0
    %113 = vmatprep.subr.bf16.mxu0 0
    %114 = vmatpush1.bf16.msra.mxu0 0
    %115 = vmatprep.subr.bf16.mxu0 0
    %116 = vmatpush1.bf16.msra.mxu0 0
    %117 = vmatprep.subr.bf16.mxu0 0
    %118 = vmatpush1.bf16.msra.mxu0 0
    %119 = vmatprep.subr.bf16.mxu0 0
    %120 = vmatpush1.bf16.msra.mxu0 0
    %121 = vmatprep.subr.bf16.mxu0 0
    %122 = vmatpush1.bf16.msra.mxu0 0
    %123 = vmatprep.subr.bf16.mxu0 0
    %124 = vmatpush1.bf16.msra.mxu0 0
    %125 = vmatprep.mubr.bf16.mxu0 0
    %126 = vmatmul.mubr.bf16.gmra.mrb[0].mxu0 %v91
    %v127 = vpop.f32.mrb[0].mxu0
    %v128 = vadd.f32 %v88, %v127
    %v129 = vpop.f32.mrb[0].mxu0
    %v130 = vpop.f32.mrb[0].mxu0
    %v131 = vpop.f32.mrb[0].mxu0
    %132 = vdwg.mxu0
    %vm133 = vcmask 58368
    %v134 = vsel %vm133, %v128, -inf
    %135 = vmax.xlane.f32.xlu0 %v134
    %v136 = vpop.xlane.xlu0 %135
    %vm137 = vcmp.eq.f32.partialorder %v128, %v136
    %v138 = vsel %vm137, 1, 0
    %v139 = vcvt.s32.f32 %v138
    %v140 = vpack.c.bf16 %v139, %v139
    %v141 = vsel %vm137, %v67, 8
    %v142 = vsel %vm133, %v141, 2147483647
    %v143 = vand.u32 %v142, 65535
    %v144 = vshra.s32 %v142, 16
    %v145 = vcvt.s32.f32 %v143
    %v146 = vcvt.s32.f32 %v144
    %147 = vmin.xlane.f32.xlu0 %v146
    %v148 = vpop.xlane.xlu0 %147
    %vm149 = vcmp.eq.f32.partialorder %v146, %v148
    %v150 = vsel %vm149, %v145, inf
    %151 = vmin.xlane.f32.xlu0 %v150
    %v152 = vpop.xlane.xlu0 %151
    %v153 = vcvt.f32.s32 %v152
    %v154 = vcvt.f32.s32 %v148
    %v155 = vshll.u32 %v154, 16
    %v156 = vadd.s32 %v155, %v153
    %v157 = vlaneseq
    %v158 = vshrl.u32 %v157, 7
    %v159 = vsub.s32 0, %v158
    %v160 = vrot.slane %v63, %v159
    %vm161 = vcmask 64512
    %v163 = vsel %vm161, %v140, 0
    %vm165 = vcmask 1043456
    %v167 = vsel %vm165, %v57, 0
    %169 = vmatprep.subr.bf16.mxu0 0
    %170 = vmatpush1.bf16.msra.mxu0 %v167
    %171 = vmatprep.subr.bf16.mxu0 0
    %172 = vmatpush1.bf16.msra.mxu0 0
    %173 = vmatprep.subr.bf16.mxu0 0
    %174 = vmatpush1.bf16.msra.mxu0 0
    %175 = vmatprep.subr.bf16.mxu0 0
    %176 = vmatpush1.bf16.msra.mxu0 0
    %177 = vmatprep.subr.bf16.mxu0 0
    %178 = vmatpush1.bf16.msra.mxu0 0
    %179 = vmatprep.subr.bf16.mxu0 0
    %180 = vmatpush1.bf16.msra.mxu0 0
    %181 = vmatprep.subr.bf16.mxu0 0
    %182 = vmatpush1.bf16.msra.mxu0 0
    %183 = vmatprep.subr.bf16.mxu0 0
    %184 = vmatpush1.bf16.msra.mxu0 0
    %185 = vmatprep.subr.bf16.mxu0 0
    %186 = vmatpush1.bf16.msra.mxu0 0
    %187 = vmatprep.subr.bf16.mxu0 0
    %188 = vmatpush1.bf16.msra.mxu0 0
    %189 = vmatprep.subr.bf16.mxu0 0
    %190 = vmatpush1.bf16.msra.mxu0 0
    %191 = vmatprep.subr.bf16.mxu0 0
    %192 = vmatpush1.bf16.msra.mxu0 0
    %193 = vmatprep.subr.bf16.mxu0 0
    %194 = vmatpush1.bf16.msra.mxu0 0
    %195 = vmatprep.subr.bf16.mxu0 0
    %196 = vmatpush1.bf16.msra.mxu0 0
    %197 = vmatprep.subr.bf16.mxu0 0
    %198 = vmatpush1.bf16.msra.mxu0 0
    %199 = vmatprep.subr.bf16.mxu0 0
    %200 = vmatpush1.bf16.msra.mxu0 0
    %201 = vmatprep.mubr.bf16.mxu0 0
    %202 = vmatmul.mubr.bf16.gmra.mrb[0].mxu0 %v163
    %v203 = vpop.f32.mrb[0].mxu0
    %v204 = vadd.f32 %v160, %v203
    %v205 = vpop.f32.mrb[0].mxu0
    %v206 = vpop.f32.mrb[0].mxu0
    %v207 = vpop.f32.mrb[0].mxu0
    %208 = vdwg.mxu0
    %v209 = vsel %vm133, %v204, -inf
    %210 = vmax.xlane.f32.xlu0 %v209
    %v211 = vpop.xlane.xlu0 %210
    %vm212 = vcmp.eq.f32.partialorder %v204, %v211
    %v213 = vsel %vm212, 1, 0
    %v214 = vcvt.s32.f32 %v213
    %v215 = vpack.c.bf16 %v214, %v214
    %v216 = vsel %vm212, %v67, 8
    %v217 = vsel %vm133, %v216, 2147483647
    %v218 = vand.u32 %v217, 65535
    %v219 = vshra.s32 %v217, 16
    %v220 = vcvt.s32.f32 %v218
    %v221 = vcvt.s32.f32 %v219
    %222 = vmin.xlane.f32.xlu0 %v221
    %v223 = vpop.xlane.xlu0 %222
    %vm224 = vcmp.eq.f32.partialorder %v221, %v223
    %v225 = vsel %vm224, %v220, inf
    %226 = vmin.xlane.f32.xlu0 %v225
    %v227 = vpop.xlane.xlu0 %226
    %v228 = vcvt.f32.s32 %v227
    %v229 = vcvt.f32.s32 %v223
    %v230 = vshll.u32 %v229, 16
    %v231 = vadd.s32 %v230, %v228
    %v232 = vadd.s32 %v231, 1
    %v233 = vlaneseq
    %v234 = vshrl.u32 %v233, 7
    %v235 = vsub.s32 0, %v234
    %v236 = vrot.slane %v64, %v235
    %v238 = vsel %vm161, %v215, 0
    %v241 = vsel %vm165, %v59, 0
    %243 = vmatprep.subr.bf16.mxu0 0
    %244 = vmatpush1.bf16.msra.mxu0 %v241
    %245 = vmatprep.subr.bf16.mxu0 0
    %246 = vmatpush1.bf16.msra.mxu0 0
    %247 = vmatprep.subr.bf16.mxu0 0
    %248 = vmatpush1.bf16.msra.mxu0 0
    %249 = vmatprep.subr.bf16.mxu0 0
    %250 = vmatpush1.bf16.msra.mxu0 0
    %251 = vmatprep.subr.bf16.mxu0 0
    %252 = vmatpush1.bf16.msra.mxu0 0
    %253 = vmatprep.subr.bf16.mxu0 0
    %254 = vmatpush1.bf16.msra.mxu0 0
    %255 = vmatprep.subr.bf16.mxu0 0
    %256 = vmatpush1.bf16.msra.mxu0 0
    %257 = vmatprep.subr.bf16.mxu0 0
    %258 = vmatpush1.bf16.msra.mxu0 0
    %259 = vmatprep.subr.bf16.mxu0 0
    %260 = vmatpush1.bf16.msra.mxu0 0
    %261 = vmatprep.subr.bf16.mxu0 0
    %262 = vmatpush1.bf16.msra.mxu0 0
    %263 = vmatprep.subr.bf16.mxu0 0
    %264 = vmatpush1.bf16.msra.mxu0 0
    %265 = vmatprep.subr.bf16.mxu0 0
    %266 = vmatpush1.bf16.msra.mxu0 0
    %267 = vmatprep.subr.bf16.mxu0 0
    %268 = vmatpush1.bf16.msra.mxu0 0
    %269 = vmatprep.subr.bf16.mxu0 0
    %270 = vmatpush1.bf16.msra.mxu0 0
    %271 = vmatprep.subr.bf16.mxu0 0
    %272 = vmatpush1.bf16.msra.mxu0 0
    %273 = vmatprep.subr.bf16.mxu0 0
    %274 = vmatpush1.bf16.msra.mxu0 0
    %275 = vmatprep.mubr.bf16.mxu0 0
    %276 = vmatmul.mubr.bf16.gmra.mrb[0].mxu0 %v238
    %v277 = vpop.f32.mrb[0].mxu0
    %v278 = vadd.f32 %v236, %v277
    %v279 = vpop.f32.mrb[0].mxu0
    %v280 = vpop.f32.mrb[0].mxu0
    %v281 = vpop.f32.mrb[0].mxu0
    %282 = vdwg.mxu0
    %v283 = vsel %vm133, %v278, -inf
    %284 = vmax.xlane.f32.xlu0 %v283
    %v285 = vpop.xlane.xlu0 %284
    %vm286 = vcmp.eq.f32.partialorder %v278, %v285
    %v287 = vsel %vm286, 1, 0
    %v288 = vcvt.s32.f32 %v287
    %v289 = vpack.c.bf16 %v288, %v288
    %v290 = vsel %vm286, %v67, 8
    %v291 = vsel %vm133, %v290, 2147483647
    %v292 = vand.u32 %v291, 65535
    %v293 = vshra.s32 %v291, 16
    %v294 = vcvt.s32.f32 %v292
    %v295 = vcvt.s32.f32 %v293
    %296 = vmin.xlane.f32.xlu0 %v295
    %v297 = vpop.xlane.xlu0 %296
    %vm298 = vcmp.eq.f32.partialorder %v295, %v297
    %v299 = vsel %vm298, %v294, inf
    %300 = vmin.xlane.f32.xlu0 %v299
    %v301 = vpop.xlane.xlu0 %300
    %v302 = vcvt.f32.s32 %v301
    %v303 = vcvt.f32.s32 %v297
    %v304 = vshll.u32 %v303, 16
    %v305 = vadd.s32 %v304, %v302
    %v306 = vlaneseq
    %v307 = vshrl.u32 %v306, 7
    %v308 = vsub.s32 0, %v307
    %v309 = vrot.slane %v65, %v308
    %v311 = vsel %vm161, %v289, 0
    %v314 = vsel %vm165, %v61, 0
    %316 = vmatprep.subr.bf16.mxu0 0
    %317 = vmatpush1.bf16.msra.mxu0 %v314
    %318 = vmatprep.subr.bf16.mxu0 0
    %319 = vmatpush1.bf16.msra.mxu0 0
    %320 = vmatprep.subr.bf16.mxu0 0
    %321 = vmatpush1.bf16.msra.mxu0 0
    %322 = vmatprep.subr.bf16.mxu0 0
    %323 = vmatpush1.bf16.msra.mxu0 0
    %324 = vmatprep.subr.bf16.mxu0 0
    %325 = vmatpush1.bf16.msra.mxu0 0
    %326 = vmatprep.subr.bf16.mxu0 0
    %327 = vmatpush1.bf16.msra.mxu0 0
    %328 = vmatprep.subr.bf16.mxu0 0
    %329 = vmatpush1.bf16.msra.mxu0 0
    %330 = vmatprep.subr.bf16.mxu0 0
    %331 = vmatpush1.bf16.msra.mxu0 0
    %332 = vmatprep.subr.bf16.mxu0 0
    %333 = vmatpush1.bf16.msra.mxu0 0
    %334 = vmatprep.subr.bf16.mxu0 0
    %335 = vmatpush1.bf16.msra.mxu0 0
    %336 = vmatprep.subr.bf16.mxu0 0
    %337 = vmatpush1.bf16.msra.mxu0 0
    %338 = vmatprep.subr.bf16.mxu0 0
    %339 = vmatpush1.bf16.msra.mxu0 0
    %340 = vmatprep.subr.bf16.mxu0 0
    %341 = vmatpush1.bf16.msra.mxu0 0
    %342 = vmatprep.subr.bf16.mxu0 0
    %343 = vmatpush1.bf16.msra.mxu0 0
    %344 = vmatprep.subr.bf16.mxu0 0
    %345 = vmatpush1.bf16.msra.mxu0 0
    %346 = vmatprep.subr.bf16.mxu0 0
    %347 = vmatpush1.bf16.msra.mxu0 0
    %348 = vmatprep.mubr.bf16.mxu0 0
    %349 = vmatmul.mubr.bf16.gmra.mrb[0].mxu0 %v311
    %v350 = vpop.f32.mrb[0].mxu0
    %v351 = vadd.f32 %v309, %v350
    %v352 = vpop.f32.mrb[0].mxu0
    %v353 = vpop.f32.mrb[0].mxu0
    %v354 = vpop.f32.mrb[0].mxu0
    %355 = vdwg.mxu0
    %v356 = vsel %vm133, %v351, -inf
    %357 = vmax.xlane.f32.xlu0 %v356
    %v358 = vpop.xlane.xlu0 %357
    %vm359 = vcmp.eq.f32.partialorder %v351, %v358
    %v360 = vsel %vm359, 1, 0
    %v361 = vcvt.s32.f32 %v360
    %v362 = vpack.c.bf16 %v361, %v361
    %v363 = vsel %vm359, %v67, 8
    %v364 = vsel %vm133, %v363, 2147483647
    %v365 = vand.u32 %v364, 65535
    %v366 = vshra.s32 %v364, 16
    %v367 = vcvt.s32.f32 %v365
    %v368 = vcvt.s32.f32 %v366
    %369 = vmin.xlane.f32.xlu0 %v368
    %v370 = vpop.xlane.xlu0 %369
    %vm371 = vcmp.eq.f32.partialorder %v368, %v370
    %v372 = vsel %vm371, %v367, inf
    %373 = vmin.xlane.f32.xlu0 %v372
    %v374 = vpop.xlane.xlu0 %373
    %v375 = vcvt.f32.s32 %v374
    %v376 = vcvt.f32.s32 %v370
    %v377 = vshll.u32 %v376, 16
    %v378 = vadd.s32 %v377, %v375
    %v379 = vadd.s32 %v378, 1
    %v380 = vlaneseq
    %v381 = vshrl.u32 %v380, 7
    %v382 = vsub.s32 0, %v381
    %v383 = vrot.slane %v32, %v382
    %v385 = vsel %vm161, %v362, 0
    %v388 = vsel %vm165, %v55, 0
    %390 = vmatprep.subr.bf16.mxu0 0
    %391 = vmatpush1.bf16.msra.mxu0 %v388
    %392 = vmatprep.subr.bf16.mxu0 0
    %393 = vmatpush1.bf16.msra.mxu0 0
    %394 = vmatprep.subr.bf16.mxu0 0
    %395 = vmatpush1.bf16.msra.mxu0 0
    %396 = vmatprep.subr.bf16.mxu0 0
    %397 = vmatpush1.bf16.msra.mxu0 0
    %398 = vmatprep.subr.bf16.mxu0 0
    %399 = vmatpush1.bf16.msra.mxu0 0
    %400 = vmatprep.subr.bf16.mxu0 0
    %401 = vmatpush1.bf16.msra.mxu0 0
    %402 = vmatprep.subr.bf16.mxu0 0
    %403 = vmatpush1.bf16.msra.mxu0 0
    %404 = vmatprep.subr.bf16.mxu0 0
    %405 = vmatpush1.bf16.msra.mxu0 0
    %406 = vmatprep.subr.bf16.mxu0 0
    %407 = vmatpush1.bf16.msra.mxu0 0
    %408 = vmatprep.subr.bf16.mxu0 0
    %409 = vmatpush1.bf16.msra.mxu0 0
    %410 = vmatprep.subr.bf16.mxu0 0
    %411 = vmatpush1.bf16.msra.mxu0 0
    %412 = vmatprep.subr.bf16.mxu0 0
    %413 = vmatpush1.bf16.msra.mxu0 0
    %414 = vmatprep.subr.bf16.mxu0 0
    %415 = vmatpush1.bf16.msra.mxu0 0
    %416 = vmatprep.subr.bf16.mxu0 0
    %417 = vmatpush1.bf16.msra.mxu0 0
    %418 = vmatprep.subr.bf16.mxu0 0
    %419 = vmatpush1.bf16.msra.mxu0 0
    %420 = vmatprep.subr.bf16.mxu0 0
    %421 = vmatpush1.bf16.msra.mxu0 0
    %422 = vmatprep.mubr.bf16.mxu0 0
    %423 = vmatmul.mubr.bf16.gmra.mrb[0].mxu0 %v385
    %v424 = vpop.f32.mrb[0].mxu0
    %v425 = vadd.f32 %v383, %v424
    %v426 = vpop.f32.mrb[0].mxu0
    %v427 = vpop.f32.mrb[0].mxu0
    %v428 = vpop.f32.mrb[0].mxu0
    %429 = vdwg.mxu0
    %v430 = vpack.c.bf16 %v425, %v425
    %v431 = vlaneseq
    %v432 = vshrl.u32 %v431, 7
    %v433 = vsub.s32 0, %v432
    %v434 = vrot.slane %v33, %v433
    %v436 = vsel %vm89, %v430, 0
    %438 = vmatprep.subr.bf16.mxu0 0
    %439 = vmatpush1.bf16.msra.mxu0 %v52
    %440 = vmatprep.subr.bf16.mxu0 0
    %441 = vmatpush1.bf16.msra.mxu0 %v53
    %442 = vmatprep.subr.bf16.mxu0 0
    %443 = vmatpush1.bf16.msra.mxu0 0
    %444 = vmatprep.subr.bf16.mxu0 0
    %445 = vmatpush1.bf16.msra.mxu0 0
    %446 = vmatprep.subr.bf16.mxu0 0
    %447 = vmatpush1.bf16.msra.mxu0 0
    %448 = vmatprep.subr.bf16.mxu0 0
    %449 = vmatpush1.bf16.msra.mxu0 0
    %450 = vmatprep.subr.bf16.mxu0 0
    %451 = vmatpush1.bf16.msra.mxu0 0
    %452 = vmatprep.subr.bf16.mxu0 0
    %453 = vmatpush1.bf16.msra.mxu0 0
    %454 = vmatprep.subr.bf16.mxu0 0
    %455 = vmatpush1.bf16.msra.mxu0 0
    %456 = vmatprep.subr.bf16.mxu0 0
    %457 = vmatpush1.bf16.msra.mxu0 0
    %458 = vmatprep.subr.bf16.mxu0 0
    %459 = vmatpush1.bf16.msra.mxu0 0
    %460 = vmatprep.subr.bf16.mxu0 0
    %461 = vmatpush1.bf16.msra.mxu0 0
    %462 = vmatprep.subr.bf16.mxu0 0
    %463 = vmatpush1.bf16.msra.mxu0 0
    %464 = vmatprep.subr.bf16.mxu0 0
    %465 = vmatpush1.bf16.msra.mxu0 0
    %466 = vmatprep.subr.bf16.mxu0 0
    %467 = vmatpush1.bf16.msra.mxu0 0
    %468 = vmatprep.subr.bf16.mxu0 0
    %469 = vmatpush1.bf16.msra.mxu0 0
    %470 = vmatprep.mubr.bf16.mxu0 0
    %471 = vmatmul.mubr.bf16.gmra.mrb[0].mxu0 %v436
    %v472 = vpop.f32.mrb[0].mxu0
    %v473 = vadd.f32 %v434, %v472
    %v474 = vpop.f32.mrb[0].mxu0
    %v475 = vpop.f32.mrb[0].mxu0
    %v476 = vpop.f32.mrb[0].mxu0
    %477 = vdwg.mxu0
    %vm478 = vcmask 17408
    %479 = vst.msk [vmem:[%s3] sm:$0x3] %vm478, 0
    %v480 = vlaneseq
    %v481 = vshrl.u32 %v480, 7
    %v482 = vsub.s32 0, %v481
    %v483 = vrot.slane %v31, %v482
    %484 = vmatprep.subr.bf16.mxu0 0
    %485 = vmatpush1.bf16.msra.mxu0 %v40
    %486 = vmatprep.subr.bf16.mxu0 0
    %487 = vmatpush1.bf16.msra.mxu0 %v41
    %488 = vmatprep.subr.bf16.mxu0 0
    %489 = vmatpush1.bf16.msra.mxu0 0
    %490 = vmatprep.subr.bf16.mxu0 0
    %491 = vmatpush1.bf16.msra.mxu0 0
    %492 = vmatprep.subr.bf16.mxu0 0
    %493 = vmatpush1.bf16.msra.mxu0 0
    %494 = vmatprep.subr.bf16.mxu0 0
    %495 = vmatpush1.bf16.msra.mxu0 0
    %496 = vmatprep.subr.bf16.mxu0 0
    %497 = vmatpush1.bf16.msra.mxu0 0
    %498 = vmatprep.subr.bf16.mxu0 0
    %499 = vmatpush1.bf16.msra.mxu0 0
    %500 = vmatprep.subr.bf16.mxu0 0
    %501 = vmatpush1.bf16.msra.mxu0 0
    %502 = vmatprep.subr.bf16.mxu0 0
    %503 = vmatpush1.bf16.msra.mxu0 0
    %504 = vmatprep.subr.bf16.mxu0 0
    %505 = vmatpush1.bf16.msra.mxu0 0
    %506 = vmatprep.subr.bf16.mxu0 0
    %507 = vmatpush1.bf16.msra.mxu0 0
    %508 = vmatprep.subr.bf16.mxu0 0
    %509 = vmatpush1.bf16.msra.mxu0 0
    %510 = vmatprep.subr.bf16.mxu0 0
    %511 = vmatpush1.bf16.msra.mxu0 0
    %512 = vmatprep.subr.bf16.mxu0 0
    %513 = vmatpush1.bf16.msra.mxu0 0
    %514 = vmatprep.subr.bf16.mxu0 0
    %515 = vmatpush1.bf16.msra.mxu0 0
    %516 = vmatprep.mubr.bf16.mxu0 0
    %517 = vmatmul.mubr.bf16.gmra.mrb[0].mxu0 %v436
    %v518 = vpop.f32.mrb[0].mxu0
    %v519 = vadd.f32 %v483, %v518
    %v520 = vpop.f32.mrb[0].mxu0
    %v521 = vpop.f32.mrb[0].mxu0
    %v522 = vpop.f32.mrb[0].mxu0
    %523 = vdwg.mxu0
    %v524 = vpack.c.bf16 %v519, %v519
    %v526 = vsel %vm89, %v524, 0
    %528 = vmatprep.subr.bf16.mxu0 0
    %529 = vmatpush1.bf16.msra.mxu0 %v46
    %530 = vmatprep.subr.bf16.mxu0 0
    %531 = vmatpush1.bf16.msra.mxu0 %v47
    %532 = vmatprep.subr.bf16.mxu0 0
    %533 = vmatpush1.bf16.msra.mxu0 0
    %534 = vmatprep.subr.bf16.mxu0 0
    %535 = vmatpush1.bf16.msra.mxu0 0
    %536 = vmatprep.subr.bf16.mxu0 0
    %537 = vmatpush1.bf16.msra.mxu0 0
    %538 = vmatprep.subr.bf16.mxu0 0
    %539 = vmatpush1.bf16.msra.mxu0 0
    %540 = vmatprep.subr.bf16.mxu0 0
    %541 = vmatpush1.bf16.msra.mxu0 0
    %542 = vmatprep.subr.bf16.mxu0 0
    %543 = vmatpush1.bf16.msra.mxu0 0
    %544 = vmatprep.subr.bf16.mxu0 0
    %545 = vmatpush1.bf16.msra.mxu0 0
    %546 = vmatprep.subr.bf16.mxu0 0
    %547 = vmatpush1.bf16.msra.mxu0 0
    %548 = vmatprep.subr.bf16.mxu0 0
    %549 = vmatpush1.bf16.msra.mxu0 0
    %550 = vmatprep.subr.bf16.mxu0 0
    %551 = vmatpush1.bf16.msra.mxu0 0
    %552 = vmatprep.subr.bf16.mxu0 0
    %553 = vmatpush1.bf16.msra.mxu0 0
    %554 = vmatprep.subr.bf16.mxu0 0
    %555 = vmatpush1.bf16.msra.mxu0 0
    %556 = vmatprep.subr.bf16.mxu0 0
    %557 = vmatpush1.bf16.msra.mxu0 0
    %558 = vmatprep.subr.bf16.mxu0 0
    %559 = vmatpush1.bf16.msra.mxu0 0
    %560 = vmatprep.mubr.bf16.mxu0 0
    %561 = vmatmul.mubr.bf16.gmra.mrb[0].mxu0 %v526
    %v562 = vpop.f32.mrb[0].mxu0
    %v563 = vadd.f32 %v88, %v562
    %v564 = vpop.f32.mrb[0].mxu0
    %v565 = vpop.f32.mrb[0].mxu0
    %v566 = vpop.f32.mrb[0].mxu0
    %567 = vdwg.mxu0
    %v568 = vsel %vm133, %v563, -inf
    %569 = vmax.xlane.f32.xlu0 %v568
    %v570 = vpop.xlane.xlu0 %569
    %vm571 = vcmp.eq.f32.partialorder %v563, %v570
    %v572 = vsel %vm571, 1, 0
    %v573 = vcvt.s32.f32 %v572
    %v574 = vpack.c.bf16 %v573, %v573
    %v575 = vsel %vm571, %v67, 8
    %v576 = vsel %vm133, %v575, 2147483647
    %v577 = vand.u32 %v576, 65535
    %v578 = vshra.s32 %v576, 16
    %v579 = vcvt.s32.f32 %v577
    %v580 = vcvt.s32.f32 %v578
    %581 = vmin.xlane.f32.xlu0 %v580
    %v582 = vpop.xlane.xlu0 %581
    %vm583 = vcmp.eq.f32.partialorder %v580, %v582
    %v584 = vsel %vm583, %v579, inf
    %585 = vmin.xlane.f32.xlu0 %v584
    %v586 = vpop.xlane.xlu0 %585
    %v587 = vcvt.f32.s32 %v586
    %v588 = vcvt.f32.s32 %v582
    %v589 = vshll.u32 %v588, 16
    %v590 = vadd.s32 %v589, %v587
    %v592 = vsel %vm161, %v574, 0
    %594 = vmatprep.subr.bf16.mxu0 0
    %595 = vmatpush1.bf16.msra.mxu0 %v167
    %596 = vmatprep.subr.bf16.mxu0 0
    %597 = vmatpush1.bf16.msra.mxu0 0
    %598 = vmatprep.subr.bf16.mxu0 0
    %599 = vmatpush1.bf16.msra.mxu0 0
    %600 = vmatprep.subr.bf16.mxu0 0
    %601 = vmatpush1.bf16.msra.mxu0 0
    %602 = vmatprep.subr.bf16.mxu0 0
    %603 = vmatpush1.bf16.msra.mxu0 0
    %604 = vmatprep.subr.bf16.mxu0 0
    %605 = vmatpush1.bf16.msra.mxu0 0
    %606 = vmatprep.subr.bf16.mxu0 0
    %607 = vmatpush1.bf16.msra.mxu0 0
    %608 = vmatprep.subr.bf16.mxu0 0
    %609 = vmatpush1.bf16.msra.mxu0 0
    %610 = vmatprep.subr.bf16.mxu0 0
    %611 = vmatpush1.bf16.msra.mxu0 0
    %612 = vmatprep.subr.bf16.mxu0 0
    %613 = vmatpush1.bf16.msra.mxu0 0
    %614 = vmatprep.subr.bf16.mxu0 0
    %615 = vmatpush1.bf16.msra.mxu0 0
    %616 = vmatprep.subr.bf16.mxu0 0
    %617 = vmatpush1.bf16.msra.mxu0 0
    %618 = vmatprep.subr.bf16.mxu0 0
    %619 = vmatpush1.bf16.msra.mxu0 0
    %620 = vmatprep.subr.bf16.mxu0 0
    %621 = vmatpush1.bf16.msra.mxu0 0
    %622 = vmatprep.subr.bf16.mxu0 0
    %623 = vmatpush1.bf16.msra.mxu0 0
    %624 = vmatprep.subr.bf16.mxu0 0
    %625 = vmatpush1.bf16.msra.mxu0 0
    %626 = vmatprep.mubr.bf16.mxu0 0
    %627 = vmatmul.mubr.bf16.gmra.mrb[0].mxu0 %v592
    %v628 = vpop.f32.mrb[0].mxu0
    %v629 = vadd.f32 %v160, %v628
    %v630 = vpop.f32.mrb[0].mxu0
    %v631 = vpop.f32.mrb[0].mxu0
    %v632 = vpop.f32.mrb[0].mxu0
    %633 = vdwg.mxu0
    %v634 = vsel %vm133, %v629, -inf
    %635 = vmax.xlane.f32.xlu0 %v634
    %v636 = vpop.xlane.xlu0 %635
    %vm637 = vcmp.eq.f32.partialorder %v629, %v636
    %v638 = vsel %vm637, 1, 0
    %v639 = vcvt.s32.f32 %v638
    %v640 = vpack.c.bf16 %v639, %v639
    %v641 = vsel %vm637, %v67, 8
    %v642 = vsel %vm133, %v641, 2147483647
    %v643 = vand.u32 %v642, 65535
    %v644 = vshra.s32 %v642, 16
    %v645 = vcvt.s32.f32 %v643
    %v646 = vcvt.s32.f32 %v644
    %647 = vmin.xlane.f32.xlu0 %v646
    %v648 = vpop.xlane.xlu0 %647
    %vm649 = vcmp.eq.f32.partialorder %v646, %v648
    %v650 = vsel %vm649, %v645, inf
    %651 = vmin.xlane.f32.xlu0 %v650
    %v652 = vpop.xlane.xlu0 %651
    %v653 = vcvt.f32.s32 %v652
    %v654 = vcvt.f32.s32 %v648
    %v655 = vshll.u32 %v654, 16
    %v656 = vadd.s32 %v655, %v653
    %v657 = vadd.s32 %v656, 1
    %v659 = vsel %vm161, %v640, 0
    %661 = vmatprep.subr.bf16.mxu0 0
    %662 = vmatpush1.bf16.msra.mxu0 %v241
    %663 = vmatprep.subr.bf16.mxu0 0
    %664 = vmatpush1.bf16.msra.mxu0 0
    %665 = vmatprep.subr.bf16.mxu0 0
    %666 = vmatpush1.bf16.msra.mxu0 0
    %667 = vmatprep.subr.bf16.mxu0 0
    %668 = vmatpush1.bf16.msra.mxu0 0
    %669 = vmatprep.subr.bf16.mxu0 0
    %670 = vmatpush1.bf16.msra.mxu0 0
    %671 = vmatprep.subr.bf16.mxu0 0
    %672 = vmatpush1.bf16.msra.mxu0 0
    %673 = vmatprep.subr.bf16.mxu0 0
    %674 = vmatpush1.bf16.msra.mxu0 0
    %675 = vmatprep.subr.bf16.mxu0 0
    %676 = vmatpush1.bf16.msra.mxu0 0
    %677 = vmatprep.subr.bf16.mxu0 0
    %678 = vmatpush1.bf16.msra.mxu0 0
    %679 = vmatprep.subr.bf16.mxu0 0
    %680 = vmatpush1.bf16.msra.mxu0 0
    %681 = vmatprep.subr.bf16.mxu0 0
    %682 = vmatpush1.bf16.msra.mxu0 0
    %683 = vmatprep.subr.bf16.mxu0 0
    %684 = vmatpush1.bf16.msra.mxu0 0
    %685 = vmatprep.subr.bf16.mxu0 0
    %686 = vmatpush1.bf16.msra.mxu0 0
    %687 = vmatprep.subr.bf16.mxu0 0
    %688 = vmatpush1.bf16.msra.mxu0 0
    %689 = vmatprep.subr.bf16.mxu0 0
    %690 = vmatpush1.bf16.msra.mxu0 0
    %691 = vmatprep.subr.bf16.mxu0 0
    %692 = vmatpush1.bf16.msra.mxu0 0
    %693 = vmatprep.mubr.bf16.mxu0 0
    %694 = vmatmul.mubr.bf16.gmra.mrb[0].mxu0 %v659
    %v695 = vpop.f32.mrb[0].mxu0
    %v696 = vadd.f32 %v236, %v695
    %v697 = vpop.f32.mrb[0].mxu0
    %v698 = vpop.f32.mrb[0].mxu0
    %v699 = vpop.f32.mrb[0].mxu0
    %700 = vdwg.mxu0
    %v701 = vsel %vm133, %v696, -inf
    %702 = vmax.xlane.f32.xlu0 %v701
    %v703 = vpop.xlane.xlu0 %702
    %vm704 = vcmp.eq.f32.partialorder %v696, %v703
    %v705 = vsel %vm704, 1, 0
    %v706 = vcvt.s32.f32 %v705
    %v707 = vpack.c.bf16 %v706, %v706
    %v708 = vsel %vm704, %v67, 8
    %v709 = vsel %vm133, %v708, 2147483647
    %v710 = vand.u32 %v709, 65535
    %v711 = vshra.s32 %v709, 16
    %v712 = vcvt.s32.f32 %v710
    %v713 = vcvt.s32.f32 %v711
    %714 = vmin.xlane.f32.xlu0 %v713
    %v715 = vpop.xlane.xlu0 %714
    %vm716 = vcmp.eq.f32.partialorder %v713, %v715
    %v717 = vsel %vm716, %v712, inf
    %718 = vmin.xlane.f32.xlu0 %v717
    %v719 = vpop.xlane.xlu0 %718
    %v720 = vcvt.f32.s32 %v719
    %v721 = vcvt.f32.s32 %v715
    %v722 = vshll.u32 %v721, 16
    %v723 = vadd.s32 %v722, %v720
    %v725 = vsel %vm161, %v707, 0
    %727 = vmatprep.subr.bf16.mxu0 0
    %728 = vmatpush1.bf16.msra.mxu0 %v314
    %729 = vmatprep.subr.bf16.mxu0 0
    %730 = vmatpush1.bf16.msra.mxu0 0
    %731 = vmatprep.subr.bf16.mxu0 0
    %732 = vmatpush1.bf16.msra.mxu0 0
    %733 = vmatprep.subr.bf16.mxu0 0
    %734 = vmatpush1.bf16.msra.mxu0 0
    %735 = vmatprep.subr.bf16.mxu0 0
    %736 = vmatpush1.bf16.msra.mxu0 0
    %737 = vmatprep.subr.bf16.mxu0 0
    %738 = vmatpush1.bf16.msra.mxu0 0
    %739 = vmatprep.subr.bf16.mxu0 0
    %740 = vmatpush1.bf16.msra.mxu0 0
    %741 = vmatprep.subr.bf16.mxu0 0
    %742 = vmatpush1.bf16.msra.mxu0 0
    %743 = vmatprep.subr.bf16.mxu0 0
    %744 = vmatpush1.bf16.msra.mxu0 0
    %745 = vmatprep.subr.bf16.mxu0 0
    %746 = vmatpush1.bf16.msra.mxu0 0
    %747 = vmatprep.subr.bf16.mxu0 0
    %748 = vmatpush1.bf16.msra.mxu0 0
    %749 = vmatprep.subr.bf16.mxu0 0
    %750 = vmatpush1.bf16.msra.mxu0 0
    %751 = vmatprep.subr.bf16.mxu0 0
    %752 = vmatpush1.bf16.msra.mxu0 0
    %753 = vmatprep.subr.bf16.mxu0 0
    %754 = vmatpush1.bf16.msra.mxu0 0
    %755 = vmatprep.subr.bf16.mxu0 0
    %756 = vmatpush1.bf16.msra.mxu0 0
    %757 = vmatprep.subr.bf16.mxu0 0
    %758 = vmatpush1.bf16.msra.mxu0 0
    %759 = vmatprep.mubr.bf16.mxu0 0
    %760 = vmatmul.mubr.bf16.gmra.mrb[0].mxu0 %v725
    %v761 = vpop.f32.mrb[0].mxu0
    %v762 = vadd.f32 %v309, %v761
    %v763 = vpop.f32.mrb[0].mxu0
    %v764 = vpop.f32.mrb[0].mxu0
    %v765 = vpop.f32.mrb[0].mxu0
    %766 = vdwg.mxu0
    %v767 = vsel %vm133, %v762, -inf
    %768 = vmax.xlane.f32.xlu0 %v767
    %v769 = vpop.xlane.xlu0 %768
    %vm770 = vcmp.eq.f32.partialorder %v762, %v769
    %v771 = vsel %vm770, 1, 0
    %v772 = vcvt.s32.f32 %v771
    %v773 = vpack.c.bf16 %v772, %v772
    %v774 = vsel %vm770, %v67, 8
    %v775 = vsel %vm133, %v774, 2147483647
    %v776 = vand.u32 %v775, 65535
    %v777 = vshra.s32 %v775, 16
    %v778 = vcvt.s32.f32 %v776
    %v779 = vcvt.s32.f32 %v777
    %780 = vmin.xlane.f32.xlu0 %v779
    %v781 = vpop.xlane.xlu0 %780
    %vm782 = vcmp.eq.f32.partialorder %v779, %v781
    %v783 = vsel %vm782, %v778, inf
    %784 = vmin.xlane.f32.xlu0 %v783
    %v785 = vpop.xlane.xlu0 %784
    %v786 = vcvt.f32.s32 %v785
    %v787 = vcvt.f32.s32 %v781
    %v788 = vshll.u32 %v787, 16
    %v789 = vadd.s32 %v788, %v786
    %v790 = vadd.s32 %v789, 1
    %v792 = vsel %vm161, %v773, 0
    %794 = vmatprep.subr.bf16.mxu0 0
    %795 = vmatpush1.bf16.msra.mxu0 %v388
    %796 = vmatprep.subr.bf16.mxu0 0
    %797 = vmatpush1.bf16.msra.mxu0 0
    %798 = vmatprep.subr.bf16.mxu0 0
    %799 = vmatpush1.bf16.msra.mxu0 0
    %800 = vmatprep.subr.bf16.mxu0 0
    %801 = vmatpush1.bf16.msra.mxu0 0
    %802 = vmatprep.subr.bf16.mxu0 0
    %803 = vmatpush1.bf16.msra.mxu0 0
    %804 = vmatprep.subr.bf16.mxu0 0
    %805 = vmatpush1.bf16.msra.mxu0 0
    %806 = vmatprep.subr.bf16.mxu0 0
    %807 = vmatpush1.bf16.msra.mxu0 0
    %808 = vmatprep.subr.bf16.mxu0 0
    %809 = vmatpush1.bf16.msra.mxu0 0
    %810 = vmatprep.subr.bf16.mxu0 0
    %811 = vmatpush1.bf16.msra.mxu0 0
    %812 = vmatprep.subr.bf16.mxu0 0
    %813 = vmatpush1.bf16.msra.mxu0 0
    %814 = vmatprep.subr.bf16.mxu0 0
    %815 = vmatpush1.bf16.msra.mxu0 0
    %816 = vmatprep.subr.bf16.mxu0 0
    %817 = vmatpush1.bf16.msra.mxu0 0
    %818 = vmatprep.subr.bf16.mxu0 0
    %819 = vmatpush1.bf16.msra.mxu0 0
    %820 = vmatprep.subr.bf16.mxu0 0
    %821 = vmatpush1.bf16.msra.mxu0 0
    %822 = vmatprep.subr.bf16.mxu0 0
    %823 = vmatpush1.bf16.msra.mxu0 0
    %824 = vmatprep.subr.bf16.mxu0 0
    %825 = vmatpush1.bf16.msra.mxu0 0
    %826 = vmatprep.mubr.bf16.mxu0 0
    %827 = vmatmul.mubr.bf16.gmra.mrb[0].mxu0 %v792
    %v828 = vpop.f32.mrb[0].mxu0
    %v829 = vadd.f32 %v383, %v828
    %v830 = vpop.f32.mrb[0].mxu0
    %v831 = vpop.f32.mrb[0].mxu0
    %v832 = vpop.f32.mrb[0].mxu0
    %833 = vdwg.mxu0
    %v834 = vpack.c.bf16 %v829, %v829
    %v836 = vsel %vm89, %v834, 0
    %838 = vmatprep.subr.bf16.mxu0 0
    %839 = vmatpush1.bf16.msra.mxu0 %v52
    %840 = vmatprep.subr.bf16.mxu0 0
    %841 = vmatpush1.bf16.msra.mxu0 %v53
    %842 = vmatprep.subr.bf16.mxu0 0
    %843 = vmatpush1.bf16.msra.mxu0 0
    %844 = vmatprep.subr.bf16.mxu0 0
    %845 = vmatpush1.bf16.msra.mxu0 0
    %846 = vmatprep.subr.bf16.mxu0 0
    %847 = vmatpush1.bf16.msra.mxu0 0
    %848 = vmatprep.subr.bf16.mxu0 0
    %849 = vmatpush1.bf16.msra.mxu0 0
    %850 = vmatprep.subr.bf16.mxu0 0
    %851 = vmatpush1.bf16.msra.mxu0 0
    %852 = vmatprep.subr.bf16.mxu0 0
    %853 = vmatpush1.bf16.msra.mxu0 0
    %854 = vmatprep.subr.bf16.mxu0 0
    %855 = vmatpush1.bf16.msra.mxu0 0
    %856 = vmatprep.subr.bf16.mxu0 0
    %857 = vmatpush1.bf16.msra.mxu0 0
    %858 = vmatprep.subr.bf16.mxu0 0
    %859 = vmatpush1.bf16.msra.mxu0 0
    %860 = vmatprep.subr.bf16.mxu0 0
    %861 = vmatpush1.bf16.msra.mxu0 0
    %862 = vmatprep.subr.bf16.mxu0 0
    %863 = vmatpush1.bf16.msra.mxu0 0
    %864 = vmatprep.subr.bf16.mxu0 0
    %865 = vmatpush1.bf16.msra.mxu0 0
    %866 = vmatprep.subr.bf16.mxu0 0
    %867 = vmatpush1.bf16.msra.mxu0 0
    %868 = vmatprep.subr.bf16.mxu0 0
    %869 = vmatpush1.bf16.msra.mxu0 0
    %870 = vmatprep.mubr.bf16.mxu0 0
    %871 = vmatmul.mubr.bf16.gmra.mrb[0].mxu0 %v836
    %v872 = vpop.f32.mrb[0].mxu0
    %v873 = vadd.f32 %v434, %v872
    %v874 = vpop.f32.mrb[0].mxu0
    %v875 = vpop.f32.mrb[0].mxu0
    %v876 = vpop.f32.mrb[0].mxu0
    %877 = vdwg.mxu0
    %879 = vrot.lane.b32.xlu0 %v873, 96
    %v880 = vpop.permute.xlu0 %879
    %v882 = vadd.f32 %v473, %v880
    %v883 = vtanh.pop %v882
    %v884 = vlaneseq
    %v885 = vshrl.u32 %v884, 7
    %v886 = vsub.s32 0, %v885
    %v887 = vrot.slane %v34, %v886
    %v888 = vmul.f32 %v883, %v887
    %vm889 = vcmask 254976
    %v890 = vsel %vm889, %v888, 0.0
    %891 = vadd.xlane.f32.xlu0 %v890
    %v892 = vpop.xlane.xlu0 %891
    %v893 = vlaneseq
    %v894 = vshrl.u32 %v893, 7
    %v895 = vsub.s32 0, %v894
    %v896 = vrot.slane %v35, %v895
    %v897 = vadd.f32 %v892, %v896
    %vm898 = vcmp.gt.f32.partialorder %v897, 0.0
    %v899 = vsel %vm898, 1, 0
    %900 = vset.pattern.permute.xlu0 0
    %901 = vperm.xlu0 %900, %v899
    %v902 = vpop.permute.xlu0 %901
    %vm903 = vcmp.eq.s32.totalorder %v902, 1
    %v904 = vsel %vm903, %v425, 0.0
    %v905 = vadd.f32 %v904, 0.0
    %vm906 = vcmp.eq.s32.totalorder %v67, 0
    %v907 = vsel %vm906, 1, 0
    %v908 = vmul.u32 %v907, %v902
    %s909 = scalar_lea.vmem %s3, 2
    %910 = vst.msk [vmem:[%s909] sm:$0x3] %vm478, %v908
    %v911 = vpack.c.bf16 %v905, %v905
    %v913 = vsel %vm89, %v911, 0
    %915 = vmatprep.subr.bf16.mxu0 0
    %916 = vmatpush1.bf16.msra.mxu0 %v46
    %917 = vmatprep.subr.bf16.mxu0 0
    %918 = vmatpush1.bf16.msra.mxu0 %v47
    %919 = vmatprep.subr.bf16.mxu0 0
    %920 = vmatpush1.bf16.msra.mxu0 0
    %921 = vmatprep.subr.bf16.mxu0 0
    %922 = vmatpush1.bf16.msra.mxu0 0
    %923 = vmatprep.subr.bf16.mxu0 0
    %924 = vmatpush1.bf16.msra.mxu0 0
    %925 = vmatprep.subr.bf16.mxu0 0
    %926 = vmatpush1.bf16.msra.mxu0 0
    %927 = vmatprep.subr.bf16.mxu0 0
    %928 = vmatpush1.bf16.msra.mxu0 0
    %929 = vmatprep.subr.bf16.mxu0 0
    %930 = vmatpush1.bf16.msra.mxu0 0
    %931 = vmatprep.subr.bf16.mxu0 0
    %932 = vmatpush1.bf16.msra.mxu0 0
    %933 = vmatprep.subr.bf16.mxu0 0
    %934 = vmatpush1.bf16.msra.mxu0 0
    %935 = vmatprep.subr.bf16.mxu0 0
    %936 = vmatpush1.bf16.msra.mxu0 0
    %937 = vmatprep.subr.bf16.mxu0 0
    %938 = vmatpush1.bf16.msra.mxu0 0
    %939 = vmatprep.subr.bf16.mxu0 0
    %940 = vmatpush1.bf16.msra.mxu0 0
    %941 = vmatprep.subr.bf16.mxu0 0
    %942 = vmatpush1.bf16.msra.mxu0 0
    %943 = vmatprep.subr.bf16.mxu0 0
    %944 = vmatpush1.bf16.msra.mxu0 0
    %945 = vmatprep.subr.bf16.mxu0 0
    %946 = vmatpush1.bf16.msra.mxu0 0
    %947 = vmatprep.mubr.bf16.mxu0 0
    %948 = vmatmul.mubr.bf16.gmra.mrb[0].mxu0 %v913
    %v949 = vpop.f32.mrb[0].mxu0
    %v950 = vadd.f32 %v88, %v949
    %v951 = vpop.f32.mrb[0].mxu0
    %v952 = vpop.f32.mrb[0].mxu0
    %v953 = vpop.f32.mrb[0].mxu0
    %954 = vdwg.mxu0
    %v955 = vsel %vm133, %v950, -inf
    %956 = vmax.xlane.f32.xlu0 %v955
    %v957 = vpop.xlane.xlu0 %956
    %vm958 = vcmp.eq.f32.partialorder %v950, %v957
    %v959 = vsel %vm958, 1, 0
    %v960 = vcvt.s32.f32 %v959
    %v961 = vpack.c.bf16 %v960, %v960
    %v962 = vsel %vm958, %v67, 8
    %v963 = vsel %vm133, %v962, 2147483647
    %v964 = vand.u32 %v963, 65535
    %v965 = vshra.s32 %v963, 16
    %v966 = vcvt.s32.f32 %v964
    %v967 = vcvt.s32.f32 %v965
    %968 = vmin.xlane.f32.xlu0 %v967
    %v969 = vpop.xlane.xlu0 %968
    %vm970 = vcmp.eq.f32.partialorder %v967, %v969
    %v971 = vsel %vm970, %v966, inf
    %972 = vmin.xlane.f32.xlu0 %v971
    %v973 = vpop.xlane.xlu0 %972
    %v974 = vcvt.f32.s32 %v973
    %v975 = vcvt.f32.s32 %v969
    %v976 = vshll.u32 %v975, 16
    %v977 = vadd.s32 %v976, %v974
    %v979 = vsel %vm161, %v961, 0
    %981 = vmatprep.subr.bf16.mxu0 0
    %982 = vmatpush1.bf16.msra.mxu0 %v167
    %983 = vmatprep.subr.bf16.mxu0 0
    %984 = vmatpush1.bf16.msra.mxu0 0
    %985 = vmatprep.subr.bf16.mxu0 0
    %986 = vmatpush1.bf16.msra.mxu0 0
    %987 = vmatprep.subr.bf16.mxu0 0
    %988 = vmatpush1.bf16.msra.mxu0 0
    %989 = vmatprep.subr.bf16.mxu0 0
    %990 = vmatpush1.bf16.msra.mxu0 0
    %991 = vmatprep.subr.bf16.mxu0 0
    %992 = vmatpush1.bf16.msra.mxu0 0
    %993 = vmatprep.subr.bf16.mxu0 0
    %994 = vmatpush1.bf16.msra.mxu0 0
    %995 = vmatprep.subr.bf16.mxu0 0
    %996 = vmatpush1.bf16.msra.mxu0 0
    %997 = vmatprep.subr.bf16.mxu0 0
    %998 = vmatpush1.bf16.msra.mxu0 0
    %999 = vmatprep.subr.bf16.mxu0 0
    %1000 = vmatpush1.bf16.msra.mxu0 0
    %1001 = vmatprep.subr.bf16.mxu0 0
    %1002 = vmatpush1.bf16.msra.mxu0 0
    %1003 = vmatprep.subr.bf16.mxu0 0
    %1004 = vmatpush1.bf16.msra.mxu0 0
    %1005 = vmatprep.subr.bf16.mxu0 0
    %1006 = vmatpush1.bf16.msra.mxu0 0
    %1007 = vmatprep.subr.bf16.mxu0 0
    %1008 = vmatpush1.bf16.msra.mxu0 0
    %1009 = vmatprep.subr.bf16.mxu0 0
    %1010 = vmatpush1.bf16.msra.mxu0 0
    %1011 = vmatprep.subr.bf16.mxu0 0
    %1012 = vmatpush1.bf16.msra.mxu0 0
    %1013 = vmatprep.mubr.bf16.mxu0 0
    %1014 = vmatmul.mubr.bf16.gmra.mrb[0].mxu0 %v979
    %v1015 = vpop.f32.mrb[0].mxu0
    %v1016 = vadd.f32 %v160, %v1015
    %v1017 = vpop.f32.mrb[0].mxu0
    %v1018 = vpop.f32.mrb[0].mxu0
    %v1019 = vpop.f32.mrb[0].mxu0
    %1020 = vdwg.mxu0
    %v1021 = vsel %vm133, %v1016, -inf
    %1022 = vmax.xlane.f32.xlu0 %v1021
    %v1023 = vpop.xlane.xlu0 %1022
    %vm1024 = vcmp.eq.f32.partialorder %v1016, %v1023
    %v1025 = vsel %vm1024, 1, 0
    %v1026 = vcvt.s32.f32 %v1025
    %v1027 = vpack.c.bf16 %v1026, %v1026
    %v1028 = vsel %vm1024, %v67, 8
    %v1029 = vsel %vm133, %v1028, 2147483647
    %v1030 = vand.u32 %v1029, 65535
    %v1031 = vshra.s32 %v1029, 16
    %v1032 = vcvt.s32.f32 %v1030
    %v1033 = vcvt.s32.f32 %v1031
    %1034 = vmin.xlane.f32.xlu0 %v1033
    %v1035 = vpop.xlane.xlu0 %1034
    %vm1036 = vcmp.eq.f32.partialorder %v1033, %v1035
    %v1037 = vsel %vm1036, %v1032, inf
    %1038 = vmin.xlane.f32.xlu0 %v1037
    %v1039 = vpop.xlane.xlu0 %1038
    %v1040 = vcvt.f32.s32 %v1039
    %v1041 = vcvt.f32.s32 %v1035
    %v1042 = vshll.u32 %v1041, 16
    %v1043 = vadd.s32 %v1042, %v1040
    %v1044 = vadd.s32 %v1043, 1
    %v1046 = vsel %vm161, %v1027, 0
    %1048 = vmatprep.subr.bf16.mxu0 0
    %1049 = vmatpush1.bf16.msra.mxu0 %v241
    %1050 = vmatprep.subr.bf16.mxu0 0
    %1051 = vmatpush1.bf16.msra.mxu0 0
    %1052 = vmatprep.subr.bf16.mxu0 0
    %1053 = vmatpush1.bf16.msra.mxu0 0
    %1054 = vmatprep.subr.bf16.mxu0 0
    %1055 = vmatpush1.bf16.msra.mxu0 0
    %1056 = vmatprep.subr.bf16.mxu0 0
    %1057 = vmatpush1.bf16.msra.mxu0 0
    %1058 = vmatprep.subr.bf16.mxu0 0
    %1059 = vmatpush1.bf16.msra.mxu0 0
    %1060 = vmatprep.subr.bf16.mxu0 0
    %1061 = vmatpush1.bf16.msra.mxu0 0
    %1062 = vmatprep.subr.bf16.mxu0 0
    %1063 = vmatpush1.bf16.msra.mxu0 0
    %1064 = vmatprep.subr.bf16.mxu0 0
    %1065 = vmatpush1.bf16.msra.mxu0 0
    %1066 = vmatprep.subr.bf16.mxu0 0
    %1067 = vmatpush1.bf16.msra.mxu0 0
    %1068 = vmatprep.subr.bf16.mxu0 0
    %1069 = vmatpush1.bf16.msra.mxu0 0
    %1070 = vmatprep.subr.bf16.mxu0 0
    %1071 = vmatpush1.bf16.msra.mxu0 0
    %1072 = vmatprep.subr.bf16.mxu0 0
    %1073 = vmatpush1.bf16.msra.mxu0 0
    %1074 = vmatprep.subr.bf16.mxu0 0
    %1075 = vmatpush1.bf16.msra.mxu0 0
    %1076 = vmatprep.subr.bf16.mxu0 0
    %1077 = vmatpush1.bf16.msra.mxu0 0
    %1078 = vmatprep.subr.bf16.mxu0 0
    %1079 = vmatpush1.bf16.msra.mxu0 0
    %1080 = vmatprep.mubr.bf16.mxu0 0
    %1081 = vmatmul.mubr.bf16.gmra.mrb[0].mxu0 %v1046
    %v1082 = vpop.f32.mrb[0].mxu0
    %v1083 = vadd.f32 %v236, %v1082
    %v1084 = vpop.f32.mrb[0].mxu0
    %v1085 = vpop.f32.mrb[0].mxu0
    %v1086 = vpop.f32.mrb[0].mxu0
    %1087 = vdwg.mxu0
    %v1088 = vsel %vm133, %v1083, -inf
    %1089 = vmax.xlane.f32.xlu0 %v1088
    %v1090 = vpop.xlane.xlu0 %1089
    %vm1091 = vcmp.eq.f32.partialorder %v1083, %v1090
    %v1092 = vsel %vm1091, 1, 0
    %v1093 = vcvt.s32.f32 %v1092
    %v1094 = vpack.c.bf16 %v1093, %v1093
    %v1095 = vsel %vm1091, %v67, 8
    %v1096 = vsel %vm133, %v1095, 2147483647
    %v1097 = vand.u32 %v1096, 65535
    %v1098 = vshra.s32 %v1096, 16
    %v1099 = vcvt.s32.f32 %v1097
    %v1100 = vcvt.s32.f32 %v1098
    %1101 = vmin.xlane.f32.xlu0 %v1100
    %v1102 = vpop.xlane.xlu0 %1101
    %vm1103 = vcmp.eq.f32.partialorder %v1100, %v1102
    %v1104 = vsel %vm1103, %v1099, inf
    %1105 = vmin.xlane.f32.xlu0 %v1104
    %v1106 = vpop.xlane.xlu0 %1105
    %v1107 = vcvt.f32.s32 %v1106
    %v1108 = vcvt.f32.s32 %v1102
    %v1109 = vshll.u32 %v1108, 16
    %v1110 = vadd.s32 %v1109, %v1107
    %v1112 = vsel %vm161, %v1094, 0
    %1114 = vmatprep.subr.bf16.mxu0 0
    %1115 = vmatpush1.bf16.msra.mxu0 %v314
    %1116 = vmatprep.subr.bf16.mxu0 0
    %1117 = vmatpush1.bf16.msra.mxu0 0
    %1118 = vmatprep.subr.bf16.mxu0 0
    %1119 = vmatpush1.bf16.msra.mxu0 0
    %1120 = vmatprep.subr.bf16.mxu0 0
    %1121 = vmatpush1.bf16.msra.mxu0 0
    %1122 = vmatprep.subr.bf16.mxu0 0
    %1123 = vmatpush1.bf16.msra.mxu0 0
    %1124 = vmatprep.subr.bf16.mxu0 0
    %1125 = vmatpush1.bf16.msra.mxu0 0
    %1126 = vmatprep.subr.bf16.mxu0 0
    %1127 = vmatpush1.bf16.msra.mxu0 0
    %1128 = vmatprep.subr.bf16.mxu0 0
    %1129 = vmatpush1.bf16.msra.mxu0 0
    %1130 = vmatprep.subr.bf16.mxu0 0
    %1131 = vmatpush1.bf16.msra.mxu0 0
    %1132 = vmatprep.subr.bf16.mxu0 0
    %1133 = vmatpush1.bf16.msra.mxu0 0
    %1134 = vmatprep.subr.bf16.mxu0 0
    %1135 = vmatpush1.bf16.msra.mxu0 0
    %1136 = vmatprep.subr.bf16.mxu0 0
    %1137 = vmatpush1.bf16.msra.mxu0 0
    %1138 = vmatprep.subr.bf16.mxu0 0
    %1139 = vmatpush1.bf16.msra.mxu0 0
    %1140 = vmatprep.subr.bf16.mxu0 0
    %1141 = vmatpush1.bf16.msra.mxu0 0
    %1142 = vmatprep.subr.bf16.mxu0 0
    %1143 = vmatpush1.bf16.msra.mxu0 0
    %1144 = vmatprep.subr.bf16.mxu0 0
    %1145 = vmatpush1.bf16.msra.mxu0 0
    %1146 = vmatprep.mubr.bf16.mxu0 0
    %1147 = vmatmul.mubr.bf16.gmra.mrb[0].mxu0 %v1112
    %v1148 = vpop.f32.mrb[0].mxu0
    %v1149 = vadd.f32 %v309, %v1148
    %v1150 = vpop.f32.mrb[0].mxu0
    %v1151 = vpop.f32.mrb[0].mxu0
    %v1152 = vpop.f32.mrb[0].mxu0
    %1153 = vdwg.mxu0
    %v1154 = vsel %vm133, %v1149, -inf
    %1155 = vmax.xlane.f32.xlu0 %v1154
    %v1156 = vpop.xlane.xlu0 %1155
    %vm1157 = vcmp.eq.f32.partialorder %v1149, %v1156
    %v1158 = vsel %vm1157, 1, 0
    %v1159 = vcvt.s32.f32 %v1158
    %v1160 = vpack.c.bf16 %v1159, %v1159
    %v1161 = vsel %vm1157, %v67, 8
    %v1162 = vsel %vm133, %v1161, 2147483647
    %v1163 = vand.u32 %v1162, 65535
    %v1164 = vshra.s32 %v1162, 16
    %v1165 = vcvt.s32.f32 %v1163
    %v1166 = vcvt.s32.f32 %v1164
    %1167 = vmin.xlane.f32.xlu0 %v1166
    %v1168 = vpop.xlane.xlu0 %1167
    %vm1169 = vcmp.eq.f32.partialorder %v1166, %v1168
    %v1170 = vsel %vm1169, %v1165, inf
    %1171 = vmin.xlane.f32.xlu0 %v1170
    %v1172 = vpop.xlane.xlu0 %1171
    %v1173 = vcvt.f32.s32 %v1172
    %v1174 = vcvt.f32.s32 %v1168
    %v1175 = vshll.u32 %v1174, 16
    %v1176 = vadd.s32 %v1175, %v1173
    %v1177 = vadd.s32 %v1176, 1
    %v1179 = vsel %vm161, %v1160, 0
    %1181 = vmatprep.subr.bf16.mxu0 0
    %1182 = vmatpush1.bf16.msra.mxu0 %v388
    %1183 = vmatprep.subr.bf16.mxu0 0
    %1184 = vmatpush1.bf16.msra.mxu0 0
    %1185 = vmatprep.subr.bf16.mxu0 0
    %1186 = vmatpush1.bf16.msra.mxu0 0
    %1187 = vmatprep.subr.bf16.mxu0 0
    %1188 = vmatpush1.bf16.msra.mxu0 0
    %1189 = vmatprep.subr.bf16.mxu0 0
    %1190 = vmatpush1.bf16.msra.mxu0 0
    %1191 = vmatprep.subr.bf16.mxu0 0
    %1192 = vmatpush1.bf16.msra.mxu0 0
    %1193 = vmatprep.subr.bf16.mxu0 0
    %1194 = vmatpush1.bf16.msra.mxu0 0
    %1195 = vmatprep.subr.bf16.mxu0 0
    %1196 = vmatpush1.bf16.msra.mxu0 0
    %1197 = vmatprep.subr.bf16.mxu0 0
    %1198 = vmatpush1.bf16.msra.mxu0 0
    %1199 = vmatprep.subr.bf16.mxu0 0
    %1200 = vmatpush1.bf16.msra.mxu0 0
    %1201 = vmatprep.subr.bf16.mxu0 0
    %1202 = vmatpush1.bf16.msra.mxu0 0
    %1203 = vmatprep.subr.bf16.mxu0 0
    %1204 = vmatpush1.bf16.msra.mxu0 0
    %1205 = vmatprep.subr.bf16.mxu0 0
    %1206 = vmatpush1.bf16.msra.mxu0 0
    %1207 = vmatprep.subr.bf16.mxu0 0
    %1208 = vmatpush1.bf16.msra.mxu0 0
    %1209 = vmatprep.subr.bf16.mxu0 0
    %1210 = vmatpush1.bf16.msra.mxu0 0
    %1211 = vmatprep.subr.bf16.mxu0 0
    %1212 = vmatpush1.bf16.msra.mxu0 0
    %1213 = vmatprep.mubr.bf16.mxu0 0
    %1214 = vmatmul.mubr.bf16.gmra.mrb[0].mxu0 %v1179
    %v1215 = vpop.f32.mrb[0].mxu0
    %v1216 = vadd.f32 %v383, %v1215
    %v1217 = vpop.f32.mrb[0].mxu0
    %v1218 = vpop.f32.mrb[0].mxu0
    %v1219 = vpop.f32.mrb[0].mxu0
    %1220 = vdwg.mxu0
    %v1221 = vpack.c.bf16 %v1216, %v1216
    %v1223 = vsel %vm89, %v1221, 0
    %1225 = vmatprep.subr.bf16.mxu0 0
    %1226 = vmatpush1.bf16.msra.mxu0 %v52
    %1227 = vmatprep.subr.bf16.mxu0 0
    %1228 = vmatpush1.bf16.msra.mxu0 %v53
    %1229 = vmatprep.subr.bf16.mxu0 0
    %1230 = vmatpush1.bf16.msra.mxu0 0
    %1231 = vmatprep.subr.bf16.mxu0 0
    %1232 = vmatpush1.bf16.msra.mxu0 0
    %1233 = vmatprep.subr.bf16.mxu0 0
    %1234 = vmatpush1.bf16.msra.mxu0 0
    %1235 = vmatprep.subr.bf16.mxu0 0
    %1236 = vmatpush1.bf16.msra.mxu0 0
    %1237 = vmatprep.subr.bf16.mxu0 0
    %1238 = vmatpush1.bf16.msra.mxu0 0
    %1239 = vmatprep.subr.bf16.mxu0 0
    %1240 = vmatpush1.bf16.msra.mxu0 0
    %1241 = vmatprep.subr.bf16.mxu0 0
    %1242 = vmatpush1.bf16.msra.mxu0 0
    %1243 = vmatprep.subr.bf16.mxu0 0
    %1244 = vmatpush1.bf16.msra.mxu0 0
    %1245 = vmatprep.subr.bf16.mxu0 0
    %1246 = vmatpush1.bf16.msra.mxu0 0
    %1247 = vmatprep.subr.bf16.mxu0 0
    %1248 = vmatpush1.bf16.msra.mxu0 0
    %1249 = vmatprep.subr.bf16.mxu0 0
    %1250 = vmatpush1.bf16.msra.mxu0 0
    %1251 = vmatprep.subr.bf16.mxu0 0
    %1252 = vmatpush1.bf16.msra.mxu0 0
    %1253 = vmatprep.subr.bf16.mxu0 0
    %1254 = vmatpush1.bf16.msra.mxu0 0
    %1255 = vmatprep.subr.bf16.mxu0 0
    %1256 = vmatpush1.bf16.msra.mxu0 0
    %1257 = vmatprep.mubr.bf16.mxu0 0
    %1258 = vmatmul.mubr.bf16.gmra.mrb[0].mxu0 %v1223
    %v1259 = vpop.f32.mrb[0].mxu0
    %v1260 = vadd.f32 %v434, %v1259
    %v1261 = vpop.f32.mrb[0].mxu0
    %v1262 = vpop.f32.mrb[0].mxu0
    %v1263 = vpop.f32.mrb[0].mxu0
    %1264 = vdwg.mxu0
    %1266 = vrot.lane.b32.xlu0 %v1260, 96
    %v1267 = vpop.permute.xlu0 %1266
    %v1269 = vadd.f32 %v473, %v1267
    %v1270 = vtanh.pop %v1269
    %v1271 = vmul.f32 %v1270, %v887
    %v1272 = vsel %vm889, %v1271, 0.0
    %1273 = vadd.xlane.f32.xlu0 %v1272
    %v1274 = vpop.xlane.xlu0 %1273
    %v1275 = vadd.f32 %v1274, %v896
    %vm1276 = vcmp.gt.f32.partialorder %v1275, 0.0
    %v1277 = vsel %vm1276, 1, 0
    %1278 = vset.pattern.permute.xlu0 0
    %1279 = vperm.xlu0 %1278, %v1277
    %v1280 = vpop.permute.xlu0 %1279
    %v1281 = vmul.u32 %v907, %v1280
    %v1282 = vadd.f32 %v873, %v1267
    %v1283 = vtanh.pop %v1282
    %v1284 = vmul.f32 %v1283, %v887
    %v1285 = vsel %vm889, %v1284, 0.0
    %1286 = vadd.xlane.f32.xlu0 %v1285
    %v1287 = vpop.xlane.xlu0 %1286
    %v1288 = vadd.f32 %v1287, %v896
    %vm1289 = vcmp.gt.f32.partialorder %v1288, 0.0
    %vm1290 = vcmp.eq.s32.totalorder %v67, 1
    %v1291 = vsel %vm1290, 1, 0
    %v1292 = vsel %vm1289, 1, 0
    %1293 = vset.pattern.permute.xlu0 0
    %1294 = vperm.xlu0 %1293, %v1292
    %v1295 = vpop.permute.xlu0 %1294
    %v1296 = vmul.u32 %v1291, %v1295
    %v1297 = vadd.s32 %v1281, %v1296
    %s1298 = scalar_lea.vmem %s3, 4
    %1299 = vst.msk [vmem:[%s1298] sm:$0x3] %vm478, %v1297
    %v1300 = vmul.u32 %v907, %v156
    %v1301 = vmul.u32 %v1291, %v232
    %v1302 = vadd.s32 %v1300, %v1301
    %vm1303 = vcmp.eq.s32.totalorder %v67, 2
    %v1304 = vsel %vm1303, 1, 0
    %v1305 = vmul.u32 %v1304, %v305
    %v1306 = vadd.s32 %v1302, %v1305
    %vm1307 = vcmp.eq.s32.totalorder %v67, 3
    %v1308 = vsel %vm1307, 1, 0
    %v1309 = vmul.u32 %v1308, %v379
    %v1310 = vadd.s32 %v1306, %v1309
    %vm1311 = vcmp.eq.s32.totalorder %v67, 4
    %v1312 = vsel %vm1311, 1, 0
    %v1313 = vmul.u32 %v1312, %v590
    %v1314 = vadd.s32 %v1310, %v1313
    %vm1315 = vcmp.eq.s32.totalorder %v67, 5
    %v1316 = vsel %vm1315, 1, 0
    %v1317 = vmul.u32 %v1316, %v657
    %v1318 = vadd.s32 %v1314, %v1317
    %vm1319 = vcmp.eq.s32.totalorder %v67, 6
    %v1320 = vsel %vm1319, 1, 0
    %v1321 = vmul.u32 %v1320, %v723
    %v1322 = vadd.s32 %v1318, %v1321
    %vm1323 = vcmp.eq.s32.totalorder %v67, 7
    %v1324 = vsel %vm1323, 1, 0
    %v1325 = vmul.u32 %v1324, %v790
    %v1326 = vadd.s32 %v1322, %v1325
    %vm1327 = vcmp.eq.s32.totalorder %v67, 8
    %v1328 = vsel %vm1327, 1, 0
    %v1329 = vmul.u32 %v1328, %v977
    %v1330 = vadd.s32 %v1326, %v1329
    %vm1331 = vcmp.eq.s32.totalorder %v67, 9
    %v1332 = vsel %vm1331, 1, 0
    %v1333 = vmul.u32 %v1332, %v1044
    %v1334 = vadd.s32 %v1330, %v1333
    %vm1335 = vcmp.eq.s32.totalorder %v67, 10
    %v1336 = vsel %vm1335, 1, 0
    %v1337 = vmul.u32 %v1336, %v1110
    %v1338 = vadd.s32 %v1334, %v1337
    %vm1339 = vcmp.eq.s32.totalorder %v67, 11
    %v1340 = vsel %vm1339, 1, 0
    %v1341 = vmul.u32 %v1340, %v1177
    %v1342 = vadd.s32 %v1338, %v1341
    %vm1343 = vcmask 91136
    %1344 = vst.msk [vmem:[#allocation5] sm:$0x3] %vm1343, %v1342
    // Predicated region
    $region14: #{controller_forward.1} parent=1 // pred_check
      _
    $region15: #{controller_forward.1} parent=1 // pred_check_branch
      %1346 = sbr.rel (0) target = $region17
    $region16: #{controller_forward.1} parent=1 // pred_region
      %s1348 = ssub.s32 32, 32
      %1349 = vsyncadd [#allocation4], %s1348
      %s1351 = sshll.u32 [#allocation5], 4
      %s1352 = int_to_ptr.vmem [resolvable:$true] %s1351
      %1354 = dma.vmem_to_hbm [thread:$0]  %s1352, 32, %s2, [#allocation4]
    $region17: #{controller_forward.1} parent=1 // pred_fallthru
      _
    // Predicated region
    $region18: #{controller_forward.1} parent=1 // pred_check
      _
    $region19: #{controller_forward.1} parent=1 // pred_check_branch
      %1356 = sbr.rel (0) target = $region21
    $region20: #{controller_forward.1} parent=1 // pred_region
      _
    $region21: #{controller_forward.1} parent=1 // pred_fallthru
      _
    // Predicated region
    $region22: #{controller_forward.1} parent=1 // pred_check
      _
    $region23: #{controller_forward.1} parent=1 // pred_check_branch
      %1358 = sbr.rel (0) target = $region25
    $region24: #{controller_forward.1} parent=1 // pred_region
      %1359 = dma.done [#allocation4], 32
    $region25: #{controller_forward.1} parent=1 // pred_fallthru
      _
    // Predicated region
    $region26: #{controller_forward.1} parent=1 // pred_check
      _
    $region27: #{controller_forward.1} parent=1 // pred_check_branch
      %1361 = sbr.rel (0) target = $region29
    $region28: #{controller_forward.1} parent=1 // pred_region
      _
    $region29: #{controller_forward.1} parent=1 // pred_fallthru
      _
    %1362 = vsyncpa [#allocation3], 1
    %1363 = vsyncpa [#allocation4], 1

</llo_original>
